<compile_context>
chip_gen: v7x
topology: tpu7x:2x2x1
jax: 0.10.0
libtpu: 0.0.40
codegen_flags: <defaults>
</compile_context>

<pallas_src>
import functools
import math

import jax
import jax.numpy as jnp
from jax.experimental import pallas as pl
from jax.experimental.pallas import tpu as pltpu

_VMEM_LIMIT = 32 * 1024 * 1024
_LANE = 128
_ROW_TILES = (512, 256, 128, 64, 32, 16, 8)


# ----------------------------------------------------------------------------- utils
def _round_up(x, m):
    return (x + m - 1) // m * m


def _erf(x):
    # Abramowitz & Stegun 7.1.26 rational approximation (|err| < 1.5e-7),
    # built only from exp/mul/add/select so it lowers cleanly in Mosaic.
    a1, a2, a3, a4, a5 = 0.254829592, -0.284496736, 1.421413741, -1.453152027, 1.061405429
    p = 0.3275911
    sgn = jnp.where(x >= 0.0, 1.0, -1.0)
    ax = jnp.abs(x)
    t = 1.0 / (1.0 + p * ax)
    poly = ((((a5 * t + a4) * t + a3) * t + a2) * t + a1) * t
    return sgn * (1.0 - poly * jnp.exp(-ax * ax))


def _gelu_exact(x):
    # matches torch.nn.GELU() / F.gelu (erf formulation)
    return 0.5 * x * (1.0 + _erf(x * (1.0 / math.sqrt(2.0))))


def _pick_row_tile(m, fits, candidates=_ROW_TILES):
    """Largest row tile that fits the VMEM budget; avoid padding M when it is
    already sublane aligned (pick a tile that divides M)."""
    if m % 8 == 0:
        for t in candidates:
            if t <= m and m % t == 0 and fits(t):
                return t, m
    for t in candidates:
        if fits(t):
            return t, _round_up(m, t)
    return 8, _round_up(m, 8)


# --------------------------------------------------------------------- matmul kernels
def _mm_resident_kernel(a_ref, b_ref, bias_ref, o_ref, *, act):
    acc = jnp.dot(a_ref[...], b_ref[...], preferred_element_type=jnp.float32)
    acc = acc + bias_ref[...]
    if act == "gelu":
        acc = _gelu_exact(acc)
    o_ref[...] = acc.astype(o_ref.dtype)


def _mm_resident_res_kernel(a_ref, b_ref, bias_ref, res_ref, o_ref, *, act):
    acc = jnp.dot(a_ref[...], b_ref[...], preferred_element_type=jnp.float32)
    acc = acc + bias_ref[...]
    if act == "gelu":
        acc = _gelu_exact(acc)
    acc = acc + res_ref[...].astype(jnp.float32)
    o_ref[...] = acc.astype(o_ref.dtype)


def _mm_tiled_kernel(a_ref, b_ref, bias_ref, o_ref, acc_ref, *, act):
    @pl.when(pl.program_id(2) == 0)
    def _():
        acc_ref[...] = jnp.zeros_like(acc_ref)

    acc_ref[...] += jnp.dot(a_ref[...], b_ref[...],
                            preferred_element_type=jnp.float32)

    @pl.when(pl.program_id(2) == pl.num_programs(2) - 1)
    def _():
        acc = acc_ref[...] + bias_ref[...]
        if act == "gelu":
            acc = _gelu_exact(acc)
        o_ref[...] = acc.astype(o_ref.dtype)


def matmul_bias(a, b, bias, act=None, res=None, out_dtype=jnp.float32,
                force_general=False):
    """out = act(a @ b + bias) (+ res), bf16 MXU inputs, f32 accumulation.

    a: (M, Ka); b: (Kb, N) with Kb <= Ka (extra `a` columns — e.g. an im2col
    zero tail — hit zero-padded weight rows); bias: (N,).

    Two paths:
      * weight-resident: grid over M only; the (K, N) weight and bias are DMA'd
        once (constant index_map); optional fused residual add in the epilogue.
      * general K-tiled path with an f32 VMEM accumulator for large weights.
    """
    M, Ka = a.shape
    Kb, N = b.shape
    assert Kb <= Ka, (Kb, Ka)
    Kp = _round_up(Ka, _LANE)
    Np = _round_up(N, _LANE)
    out_bytes = jnp.dtype(out_dtype).itemsize

    a_bf = a.astype(jnp.bfloat16)
    b_p = jnp.pad(b.astype(jnp.bfloat16), ((0, Kp - Kb), (0, Np - N)))
    bias_p = jnp.pad(bias.astype(jnp.float32).reshape(1, N),
                     ((0, 0), (0, Np - N)))

    weight_bytes = Kp * Np * 2
    use_resident = ((not force_general) and weight_bytes <= 4 * 1024 * 1024
                    and Kp <= 4096 and Np <= 2560)
    fuse_res = False

    if use_resident:
        budget = 20 * 1024 * 1024
        res_bytes = 0 if res is None else res.dtype.itemsize

        def fits(t):
            need = (2 * t * Kp * 2 + 2 * weight_bytes
                    + 2 * t * Np * out_bytes + 2 * t * Np * res_bytes)
            return need <= budget

        tm, Mp = _pick_row_tile(M, fits)
        a_p = jnp.pad(a_bf, ((0, Mp - M), (0, Kp - Ka)))
        fuse_res = res is not None and Np == N and Mp == M

        in_specs = [
            pl.BlockSpec((tm, Kp), lambda i: (i, 0)),
            pl.BlockSpec((Kp, Np), lambda i: (0, 0)),   # weight resident
            pl.BlockSpec((1, Np), lambda i: (0, 0)),
        ]
        operands = [a_p, b_p, bias_p]
        if fuse_res:
            in_specs.append(pl.BlockSpec((tm, Np), lambda i: (i, 0)))
            operands.append(res)
            kernel = functools.partial(_mm_resident_res_kernel, act=act)
        else:
            kernel = functools.partial(_mm_resident_kernel, act=act)

        out = pl.pallas_call(
            kernel,
            out_shape=jax.ShapeDtypeStruct((Mp, Np), out_dtype),
            grid=(Mp // tm,),
            in_specs=in_specs,
            out_specs=pl.BlockSpec((tm, Np), lambda i: (i, 0)),
            compiler_params=pltpu.CompilerParams(
                dimension_semantics=("parallel",),
                vmem_limit_bytes=_VMEM_LIMIT),
        )(*operands)
    else:
        Mp8 = _round_up(M, 8)
        tm = 512 if Mp8 >= 512 else Mp8
        Mp = _round_up(M, tm)
        tn = 256 if Np % 256 == 0 else 128
        tk = 512 if Kp % 512 == 0 else (256 if Kp % 256 == 0 else 128)
        a_p = jnp.pad(a_bf, ((0, Mp - M), (0, Kp - Ka)))
        out = pl.pallas_call(
            functools.partial(_mm_tiled_kernel, act=act),
            out_shape=jax.ShapeDtypeStruct((Mp, Np), out_dtype),
            grid=(Mp // tm, Np // tn, Kp // tk),
            in_specs=[
                pl.BlockSpec((tm, tk), lambda i, j, k: (i, k)),
                pl.BlockSpec((tk, tn), lambda i, j, k: (k, j)),
                pl.BlockSpec((1, tn), lambda i, j, k: (0, j)),
            ],
            out_specs=pl.BlockSpec((tm, tn), lambda i, j, k: (i, j)),
            scratch_shapes=[pltpu.VMEM((tm, tn), jnp.float32)],
            compiler_params=pltpu.CompilerParams(
                dimension_semantics=("parallel", "parallel", "arbitrary"),
                vmem_limit_bytes=_VMEM_LIMIT),
        )(a_p, b_p, bias_p)

    if Mp != M or Np != N:
        out = out[:M, :N]
    if res is not None and not fuse_res:
        out = out + res.astype(out.dtype)
    return out


# ----------------------------------------------------------------------- layer norm
def _layernorm_kernel(x_ref, w_ref, b_ref, o_ref, *, eps):
    x = x_ref[...].astype(jnp.float32)
    mean = jnp.mean(x, axis=-1, keepdims=True)
    xc = x - mean
    var = jnp.mean(xc * xc, axis=-1, keepdims=True)
    y = xc * jax.lax.rsqrt(var + eps)
    o_ref[...] = (y * w_ref[...] + b_ref[...]).astype(o_ref.dtype)


def layernorm(x, w, b, eps=1e-6, out_dtype=jnp.float32):
    shape = x.shape
    C = shape[-1]
    x2 = x.reshape(-1, C)
    R = x2.shape[0]
    budget = 20 * 1024 * 1024
    xbytes = x2.dtype.itemsize
    obytes = jnp.dtype(out_dtype).itemsize

    def fits(t):
        return 2 * t * C * (xbytes + obytes) <= budget

    tr, Rp = _pick_row_tile(R, fits, candidates=(1024,) + _ROW_TILES)
    x_p = x2 if Rp == R else jnp.pad(x2, ((0, Rp - R), (0, 0)))
    out = pl.pallas_call(
        functools.partial(_layernorm_kernel, eps=eps),
        out_shape=jax.ShapeDtypeStruct((Rp, C), out_dtype),
        grid=(Rp // tr,),
        in_specs=[
            pl.BlockSpec((tr, C), lambda i: (i, 0)),
            pl.BlockSpec((1, C), lambda i: (0, 0)),
            pl.BlockSpec((1, C), lambda i: (0, 0)),
        ],
        out_specs=pl.BlockSpec((tr, C), lambda i: (i, 0)),
        compiler_params=pltpu.CompilerParams(
            dimension_semantics=("parallel",),
            vmem_limit_bytes=_VMEM_LIMIT),
    )(x_p, w.reshape(1, C).astype(jnp.float32), b.reshape(1, C).astype(jnp.float32))
    if Rp != R:
        out = out[:R]
    return out.reshape(shape)


# ------------------------------------------------------------------------- attention
def _attn_kernel(q_ref, k_ref, v_ref, ctx_ref, prob_ref, *, scale, n_frames):
    # blocks: (1, n_frames, tp, c) bf16 — tokens on sublanes, channels on lanes.
    # The frame axis is tiny (2-5); the per-token softmax over frames is
    # unrolled into lane-wide VPU ops + lane reductions (f32).
    prob_cols = []
    for i in range(n_frames):
        q_i = q_ref[0, i].astype(jnp.float32)
        s = [scale * jnp.sum(q_i * k_ref[0, j].astype(jnp.float32),
                             axis=-1, keepdims=True)
             for j in range(n_frames)]                              # each (tp, 1)
        m = s[0]
        for j in range(1, n_frames):
            m = jnp.maximum(m, s[j])
        e = [jnp.exp(t - m) for t in s]
        den = e[0]
        for j in range(1, n_frames):
            den = den + e[j]
        inv = 1.0 / den
        p = [t * inv for t in e]
        acc = p[0] * v_ref[0, 0].astype(jnp.float32)
        for j in range(1, n_frames):
            acc = acc + p[j] * v_ref[0, j].astype(jnp.float32)
        ctx_ref[0, i] = acc.astype(ctx_ref.dtype)
        prob_cols.extend(p)
    prob_ref[0] = jnp.concatenate(prob_cols, axis=-1)               # (tp, n*n)


def attention_core(qkv, scale):
    """qkv: (B, n, P, 3c) fused QKV projection output (bf16).

    Returns context (B, n, P, c) bf16 and softmax probs (B, P, n, n) f32.
    The Q/K/V planes are selected directly by BlockSpec index maps (no slice /
    transpose copies) when c is lane aligned.
    """
    B, n, P, C3 = qkv.shape
    c = C3 // 3
    budget = 16 * 1024 * 1024     # q/k/v/ctx double-buffered bf16 token tiles

    def fits(t):
        return 16 * n * t * c + 2 * t * n * n * 4 <= budget

    tp, Pp = _pick_row_tile(P, fits)

    def pad_p(t):
        return t if Pp == P else jnp.pad(t, ((0, 0), (0, 0), (0, Pp - P), (0, 0)))

    if c % _LANE == 0:
        qkv_p = pad_p(qkv.astype(jnp.bfloat16))
        operands = (qkv_p, qkv_p, qkv_p)
        in_specs = [
            pl.BlockSpec((1, n, tp, c), lambda bi, ti: (bi, 0, ti, 0)),
            pl.BlockSpec((1, n, tp, c), lambda bi, ti: (bi, 0, ti, 1)),
            pl.BlockSpec((1, n, tp, c), lambda bi, ti: (bi, 0, ti, 2)),
        ]
    else:
        # fallback: channel count not lane aligned -> split the planes apart
        operands = tuple(pad_p(qkv[..., i * c:(i + 1) * c].astype(jnp.bfloat16))
                         for i in range(3))
        in_specs = [pl.BlockSpec((1, n, tp, c), lambda bi, ti: (bi, 0, ti, 0))
                    for _ in range(3)]

    ctx, prob = pl.pallas_call(
        functools.partial(_attn_kernel, scale=scale, n_frames=n),
        out_shape=(jax.ShapeDtypeStruct((B, n, Pp, c), jnp.bfloat16),
                   jax.ShapeDtypeStruct((B, Pp, n * n), jnp.float32)),
        grid=(B, Pp // tp),
        in_specs=in_specs,
        out_specs=(pl.BlockSpec((1, n, tp, c), lambda bi, ti: (bi, 0, ti, 0)),
                   pl.BlockSpec((1, tp, n * n), lambda bi, ti: (bi, ti, 0))),
        compiler_params=pltpu.CompilerParams(
            dimension_semantics=("parallel", "parallel"),
            vmem_limit_bytes=_VMEM_LIMIT),
    )(*operands)
    if Pp != P:
        ctx = ctx[:, :, :P]
        prob = prob[:, :P]
    return ctx, prob.reshape(B, P, n, n)


# ------------------------------------------------------------------ conv glue (im2col)
def conv2d_nhwc(x, p, kh, kw, stride=1, pad=0, act=None, res=None,
                out_dtype=jnp.bfloat16):
    """NHWC conv: lane-aligned bf16 im2col rows -> fused bias/act/res matmul."""
    Nb, H, W, Cin = x.shape
    wm, b = p["wm"], p["b"]
    Cout = wm.shape[1]
    xb = x.astype(jnp.bfloat16)
    if kh == 1 and kw == 1 and stride == 1 and pad == 0:
        Ho, Wo = H, W
        patches = xb.reshape(Nb * H * W, xb.shape[-1])
    else:
        xp = jnp.pad(xb, ((0, 0), (pad, pad), (pad, pad), (0, 0)))
        Hp, Wp = H + 2 * pad, W + 2 * pad
        Ho = (Hp - kh) // stride + 1
        Wo = (Wp - kw) // stride + 1
        taps = [xp[:, i:i + stride * Ho:stride, j:j + stride * Wo:stride, :]
                for i in range(kh) for j in range(kw)]
        K = kh * kw * Cin
        Kp = _round_up(K, _LANE)
        if Kp != K:
            # lane-align the contraction dim inside the same concatenate
            taps.append(jnp.zeros((Nb, Ho, Wo, Kp - K), jnp.bfloat16))
        patches = jnp.concatenate(taps, axis=-1).reshape(Nb * Ho * Wo, -1)
    res2 = None if res is None else res.reshape(-1, Cout)
    y = matmul_bias(patches, wm, b, act=act, res=res2, out_dtype=out_dtype)
    return y.reshape(Nb, Ho, Wo, Cout)


def conv_transpose2d_nhwc(x, p, out_dtype=jnp.bfloat16):
    """ConvTranspose2d(kernel=3, stride=2, padding=1, output_padding=1) via the
    sub-pixel / stride-phase decomposition: one matmul over 4 shifted taps
    producing the 4 interleaved output phases (no zero-stuffed upsampling)."""
    Nb, H, W, Cin = x.shape
    wm, b4 = p["wm"], p["b4"]
    Cout = wm.shape[1] // 4
    xb = x.astype(jnp.bfloat16)
    xe = jnp.pad(xb, ((0, 0), (0, 1), (0, 1), (0, 0)))
    taps = [xb,                      # x[a,   b  ]
            xe[:, :H, 1:, :],        # x[a,   b+1]
            xe[:, 1:, :W, :],        # x[a+1, b  ]
            xe[:, 1:, 1:, :]]        # x[a+1, b+1]
    K = 4 * Cin
    Kp = _round_up(K, _LANE)
    if Kp != K:
        taps.append(jnp.zeros((Nb, H, W, Kp - K), jnp.bfloat16))
    patches = jnp.concatenate(taps, axis=-1).reshape(Nb * H * W, -1)
    y = matmul_bias(patches, wm, b4, out_dtype=out_dtype)        # (M, 4*Cout)
    y = y.reshape(Nb, H, W, 2, 2, Cout)                          # (..., ry, rx, C)
    y = y.transpose(0, 1, 3, 2, 4, 5).reshape(Nb, 2 * H, 2 * W, Cout)
    return y


# ----------------------------------------------------------------- parameter creation
# Weights are created directly in matmul-ready layout (bf16, pre-transposed /
# pre-assembled) so no per-forward weight transposes or concats are needed.
def _init_conv(key, cin, cout, k):
    k1, k2 = jax.random.split(key)
    bound = 1.0 / math.sqrt(cin * k * k)
    w = jax.random.uniform(k1, (cout, cin, k, k), jnp.float32, -bound, bound)
    b = jax.random.uniform(k2, (cout,), jnp.float32, -bound, bound)
    wm = w.transpose(2, 3, 1, 0).reshape(k * k * cin, cout).astype(jnp.bfloat16)
    return {"wm": wm, "b": b}


def _init_convT(key, cin, cout):
    k1, k2 = jax.random.split(key)
    bound = 1.0 / math.sqrt(cout * 9)
    w = jax.random.uniform(k1, (cin, cout, 3, 3), jnp.float32, -bound, bound)
    b = jax.random.uniform(k2, (cout,), jnp.float32, -bound, bound)
    wb = w.astype(jnp.bfloat16)
    zero = jnp.zeros((cin, cout), jnp.bfloat16)
    tap = lambda ky, kx: wb[:, :, ky, kx]
    # output-phase columns: (even,even) (even,odd) (odd,even) (odd,odd)
    # input row blocks:      x00         x01        x10        x11
    col_ee = jnp.concatenate([tap(1, 1), zero,      zero,      zero     ], axis=0)
    col_eo = jnp.concatenate([tap(1, 2), tap(1, 0), zero,      zero     ], axis=0)
    col_oe = jnp.concatenate([tap(2, 1), zero,      tap(0, 1), zero     ], axis=0)
    col_oo = jnp.concatenate([tap(2, 2), tap(2, 0), tap(0, 2), tap(0, 0)], axis=0)
    wm = jnp.concatenate([col_ee, col_eo, col_oe, col_oo], axis=1)   # (4Cin, 4Cout)
    b4 = jnp.concatenate([b, b, b, b])
    return {"wm": wm, "b4": b4}


def _init_linear(key, cin, cout):
    k1, k2 = jax.random.split(key)
    bound = 1.0 / math.sqrt(cin)
    w = jax.random.uniform(k1, (cout, cin), jnp.float32, -bound, bound)
    b = jax.random.uniform(k2, (cout,), jnp.float32, -bound, bound)
    return {"wm": w.T.astype(jnp.bfloat16), "b": b}


def _init_rdb(key, in_ch, growth, num_layer):
    keys = jax.random.split(key, num_layer + 1)
    dense, ch = [], in_ch
    for i in range(num_layer):
        dense.append(_init_conv(keys[i], ch, growth, 3))
        ch += growth
    return {"dense": dense, "conv1x1": _init_conv(keys[-1], ch, in_ch, 1)}


def _init_rdb_ds(key, in_ch, growth, num_layer):
    k1, k2 = jax.random.split(key)
    return {"rdb": _init_rdb(k1, in_ch, growth, num_layer),
            "down": _init_conv(k2, in_ch, 2 * in_ch, 5)}


def _init_cell(key, n_feats, rd_layer):
    k0, k1, k2, k3 = jax.random.split(key, 4)
    return {"F_B0": _init_conv(k0, 3, n_feats, 5),
            "F_B1": _init_rdb_ds(k1, n_feats, n_feats, rd_layer),
            "F_B2": _init_rdb_ds(k2, 2 * n_feats, int(n_feats * 3 / 2), rd_layer),
            "F_B3": _init_rdb_ds(k3, 4 * n_feats, int(n_feats * 3 / 2), rd_layer)}


def _init_block(key, c):
    ks = jax.random.split(key, 6)
    q = _init_linear(ks[0], c, c)
    k_ = _init_linear(ks[1], c, c)
    v = _init_linear(ks[2], c, c)
    return {"ln1_w": jnp.ones((c,), jnp.float32), "ln1_b": jnp.zeros((c,), jnp.float32),
            "ln2_w": jnp.ones((c,), jnp.float32), "ln2_b": jnp.zeros((c,), jnp.float32),
            "wqkv": jnp.concatenate([q["wm"], k_["wm"], v["wm"]], axis=1),
            "bqkv": jnp.concatenate([q["b"], k_["b"], v["b"]]),
            "o": _init_linear(ks[3], c, c),
            "fc1": _init_linear(ks[4], c, 2 * c),
            "fc2": _init_linear(ks[5], 2 * c, c)}


def _positional_encoding(n_frames, h, w, d):
    position = jnp.arange(h * w, dtype=jnp.float32)[:, None]
    div_term = jnp.exp(jnp.arange(d, dtype=jnp.float32) * (-math.log(10000.0) / d))
    hw_pe = jnp.sin(position * div_term).reshape(h, w, d)
    f_pos = jnp.arange(n_frames, dtype=jnp.float32)[:, None]
    f_div = jnp.exp(jnp.arange(0, d, 2, dtype=jnp.float32) * (-math.log(10000.0) / d))
    pe = jnp.zeros((n_frames, d), jnp.float32)
    pe = pe.at[:, 0::2].set(jnp.sin(f_pos * f_div))
    pe = pe.at[:, 1::2].set(jnp.cos(f_pos * f_div))
    final_pe = pe[:, None, None, :] + hw_pe[None, :, :, :]
    return final_pe[None]                                   # (1, n, h, w, d)


def init_model(key, n_feats, frames, rd_layer, num_layer, height, width):
    h8, w8 = height // 8, width // 8
    c = 8 * n_feats
    keys = jax.random.split(key, 8 + num_layer)
    g = int(n_feats * 3 / 2)
    return {
        "cell": _init_cell(keys[0], n_feats, rd_layer),
        "trans": {"final_pe": _positional_encoding(frames, h8, w8, c),
                  "blocks": [_init_block(keys[8 + i], c) for i in range(num_layer)],
                  "enc_norm_w": jnp.ones((c,), jnp.float32),
                  "enc_norm_b": jnp.zeros((c,), jnp.float32)},
        "Res_B3": _init_convT(keys[1], 8 * n_feats, 4 * n_feats),
        "Res_RD3": _init_rdb(keys[2], 4 * n_feats, g, rd_layer),
        "Res_B2": _init_convT(keys[3], 4 * n_feats, 2 * n_feats),
        "Res_RD2": _init_rdb(keys[4], 2 * n_feats, g, rd_layer),
        "Res_B1": _init_convT(keys[5], 2 * n_feats, n_feats),
        "Res_RD1": _init_rdb(keys[6], n_feats, g, rd_layer),
        "Res_B0": _init_conv(keys[7], n_feats, 3, 5),
    }


# ---------------------------------------------------------------------- forward passes
def rdb_forward(p, x):
    """Residual dense block; bf16 activations, fused conv1x1 residual add."""
    out = x.astype(jnp.bfloat16)
    x0 = out
    n_dense = len(p["dense"])
    for li, dl in enumerate(p["dense"]):
        y = conv2d_nhwc(out, dl, 3, 3, stride=1, pad=1, act="gelu",
                        out_dtype=jnp.bfloat16)
        pieces = [out, y]
        if li == n_dense - 1:
            ktot = out.shape[-1] + y.shape[-1]
            ktail = _round_up(ktot, _LANE) - ktot
            if ktail:
                # lane-align the 1x1 conv contraction dim inside this concat
                pieces.append(jnp.zeros(out.shape[:-1] + (ktail,), jnp.bfloat16))
        out = jnp.concatenate(pieces, axis=-1)
    return conv2d_nhwc(out, p["conv1x1"], 1, 1, stride=1, pad=0, res=x0,
                       out_dtype=jnp.bfloat16)


def rdb_ds_forward(p, x):
    x = rdb_forward(p["rdb"], x)
    return conv2d_nhwc(x, p["down"], 5, 5, stride=2, pad=2,
                       out_dtype=jnp.bfloat16)


def cell_forward(p, x):
    f0 = conv2d_nhwc(x, p["F_B0"], 5, 5, stride=1, pad=2, out_dtype=jnp.bfloat16)
    f1 = rdb_ds_forward(p["F_B1"], f0)
    f2 = rdb_ds_forward(p["F_B2"], f1)
    f3 = rdb_ds_forward(p["F_B3"], f2)
    return f0, f1, f2, f3


def _block(p, x, c):
    B, n, h, w, _ = x.shape
    P = h * w
    h0 = x                                                     # f32 residual trunk
    y = layernorm(x, p["ln1_w"], p["ln1_b"], out_dtype=jnp.bfloat16)
    qkv = matmul_bias(y.reshape(-1, c), p["wqkv"], p["bqkv"],
                      out_dtype=jnp.bfloat16).reshape(B, n, P, 3 * c)
    ctx, prob = attention_core(qkv, scale=1.0 / math.sqrt(c))
    attn_out = matmul_bias(ctx.reshape(-1, c), p["o"]["wm"], p["o"]["b"],
                           res=h0.reshape(-1, c), out_dtype=jnp.float32)
    x = attn_out.reshape(B, n, h, w, c)
    h1 = x
    y = layernorm(x, p["ln2_w"], p["ln2_b"], out_dtype=jnp.bfloat16)
    y = matmul_bias(y.reshape(-1, c), p["fc1"]["wm"], p["fc1"]["b"],
                    act="gelu", out_dtype=jnp.bfloat16)
    y = matmul_bias(y, p["fc2"]["wm"], p["fc2"]["b"],
                    res=h1.reshape(-1, c), out_dtype=jnp.float32)
    x = y.reshape(B, n, h, w, c)
    return x, prob                                             # prob: (B, P, n, n)


def transformer_forward(p, x, c):
    attn_ws = []
    for blk in p["blocks"]:
        x, w = _block(blk, x, c)
        attn_ws.append(w)
    x = layernorm(x, p["enc_norm_w"], p["enc_norm_b"], out_dtype=jnp.bfloat16)
    return x, attn_ws


def model_forward(params, x, *, n_feats):
    B, Fr, Cc, H, W = x.shape
    c = 8 * n_feats
    h8, w8 = H // 8, W // 8

    # ---- batched encoder (all frames at once, NHWC) ----
    x_nhwc = x.reshape(B * Fr, Cc, H, W).transpose(0, 2, 3, 1)
    f0, f1, f2, f3 = cell_forward(params["cell"], x_nhwc)

    enc_in = (f3.reshape(B, Fr, h8, w8, c).astype(jnp.float32)
              + params["trans"]["final_pe"])
    trans_out, attn_ws = transformer_forward(params["trans"], enc_in, c)

    # ---- batched decoder ----
    t = trans_out.reshape(B * Fr, h8, w8, c)
    d3 = conv_transpose2d_nhwc(t + f3, params["Res_B3"])
    d3 = rdb_forward(params["Res_RD3"], d3)
    d2 = conv_transpose2d_nhwc(d3 + f2, params["Res_B2"])
    d2 = rdb_forward(params["Res_RD2"], d2)
    d1 = conv_transpose2d_nhwc(d2 + f1, params["Res_B1"])
    d1 = rdb_forward(params["Res_RD1"], d1)
    out = conv2d_nhwc(d1 + f0, params["Res_B0"], 5, 5, stride=1, pad=2,
                      out_dtype=jnp.float32)                  # (B*Fr, H, W, 3)
    out = out.reshape(B, Fr, H, W, 3).transpose(0, 1, 4, 2, 3)
    return out, attn_ws


# ------------------------------------------------------------------------------- main
if __name__ == "__main__":
    # small, self-consistent config (scaled down from para defaults:
    # n_features=96, frames=5, transformer_layer=9, rd_layer=3, 256x256 input)
    n_feats, frames, rd_layer, num_layer = 16, 2, 1, 1
    B, H, W = 1, 32, 32

    key = jax.random.PRNGKey(0)
    pkey, xkey, akey, bkey = jax.random.split(key, 4)
    params = init_model(pkey, n_feats, frames, rd_layer, num_layer, H, W)
    x = jax.random.normal(xkey, (B, frames, 3, H, W), jnp.float32)

    # smoke-test the K-tiled general matmul path (at this small config every
    # model matmul routes through the weight-resident path)
    a = jax.random.normal(akey, (200, 300), jnp.float32)
    bm = jax.random.normal(bkey, (300, 200), jnp.float32)
    bias0 = jnp.zeros((200,), jnp.float32)
    y = jax.jit(functools.partial(matmul_bias, force_general=True))(a, bm, bias0)
    y_ref = jnp.dot(a.astype(jnp.bfloat16), bm.astype(jnp.bfloat16),
                    preferred_element_type=jnp.float32)
    assert y.shape == (200, 200)
    assert float(jnp.max(jnp.abs(y - y_ref))) < 1.0, "general matmul mismatch"

    fwd = jax.jit(functools.partial(model_forward, n_feats=n_feats))
    out, attn_ws = fwd(params, x)
    jax.block_until_ready(out)

    assert out.shape == (B, frames, 3, H, W), out.shape
    assert attn_ws[0].shape == (B, (H // 8) * (W // 8), frames, frames)
    print("KERNEL_OK")
</pallas_src>

<mosaic_0001>
module attributes {stable_mosaic.version = 11 : i64} {
  func.func @_mm_tiled_kernel(%arg0: i32, %arg1: i32, %arg2: i32, %arg3: memref<200x128xbf16, #tpu.memory_space<vmem>>, %arg4: memref<128x256xbf16, #tpu.memory_space<vmem>>, %arg5: memref<1x256xf32, #tpu.memory_space<vmem>>, %arg6: memref<200x256xf32, #tpu.memory_space<vmem>>, %arg7: memref<200x256xf32, #tpu.memory_space<vmem>>) attributes {dimension_semantics = [#tpu.dimension_semantics<parallel>, #tpu.dimension_semantics<parallel>, #tpu.dimension_semantics<arbitrary>], iteration_bounds = array<i64: 1, 1, 3>, scalar_prefetch = 0 : i64, scratch_operands = 1 : i64, tpu.core_type = #tpu.core_type<tc>, window_params = [{transform_indices = @transform_0, window_bounds = array<i64: 200, 128>}, {transform_indices = @transform_1, window_bounds = array<i64: 128, 256>}, {transform_indices = @transform_2, window_bounds = array<i64: 1, 256>}, {transform_indices = @transform_3, window_bounds = array<i64: 200, 256>}]} {
    %c0_i32 = arith.constant 0 : i32
    %0 = arith.cmpi eq, %arg2, %c0_i32 : i32
    %1 = arith.extui %0 : i1 to i32
    %c0_i32_0 = arith.constant 0 : i32
    %2 = arith.cmpi ne, %1, %c0_i32_0 : i32
    scf.if %2 {
      %cst_9 = arith.constant 0.000000e+00 : f32
      %12 = vector.broadcast %cst_9 : f32 to vector<200x256xf32>
      %c0_10 = arith.constant 0 : index
      %c0_11 = arith.constant 0 : index
      %13 = vector.load %arg7[%c0_10, %c0_11] : memref<200x256xf32, #tpu.memory_space<vmem>>, vector<200x256xf32>
      tpu.vector_store %arg7[%c0_10, %c0_11], %12 {strides = array<i32>} : memref<200x256xf32, #tpu.memory_space<vmem>>, vector<200x256xf32>,
    } else {
    }
    %c0 = arith.constant 0 : index
    %c0_1 = arith.constant 0 : index
    %3 = vector.load %arg7[%c0, %c0_1] : memref<200x256xf32, #tpu.memory_space<vmem>>, vector<200x256xf32>
    %c0_2 = arith.constant 0 : index
    %c0_3 = arith.constant 0 : index
    %4 = vector.load %arg3[%c0_2, %c0_3] : memref<200x128xbf16, #tpu.memory_space<vmem>>, vector<200x128xbf16>
    %c0_4 = arith.constant 0 : index
    %c0_5 = arith.constant 0 : index
    %5 = vector.load %arg4[%c0_4, %c0_5] : memref<128x256xbf16, #tpu.memory_space<vmem>>, vector<128x256xbf16>
    %cst = arith.constant dense<0.000000e+00> : vector<200x256xf32>
    %6 = tpu.matmul %4, %5, %cst {dimension_numbers = #tpu.dot_dimension_numbers<[1], [0], [0], [1], [0, 0, 1, 1], [], []>} : vector<200x128xbf16>, vector<128x256xbf16>, vector<200x256xf32> -> vector<200x256xf32>
    %7 = arith.addf %3, %6 : vector<200x256xf32>
    %c0_6 = arith.constant 0 : index
    %c0_7 = arith.constant 0 : index
    %8 = vector.load %arg7[%c0_6, %c0_7] : memref<200x256xf32, #tpu.memory_space<vmem>>, vector<200x256xf32>
    tpu.vector_store %arg7[%c0_6, %c0_7], %7 {strides = array<i32>} : memref<200x256xf32, #tpu.memory_space<vmem>>, vector<200x256xf32>,
    %c2_i32 = arith.constant 2 : i32
    %9 = arith.cmpi eq, %arg2, %c2_i32 : i32
    %10 = arith.extui %9 : i1 to i32
    %c0_i32_8 = arith.constant 0 : i32
    %11 = arith.cmpi ne, %10, %c0_i32_8 : i32
    scf.if %11 {
      %c0_9 = arith.constant 0 : index
      %c0_10 = arith.constant 0 : index
      %12 = vector.load %arg7[%c0_9, %c0_10] : memref<200x256xf32, #tpu.memory_space<vmem>>, vector<200x256xf32>
      %c0_11 = arith.constant 0 : index
      %c0_12 = arith.constant 0 : index
      %13 = vector.load %arg5[%c0_11, %c0_12] : memref<1x256xf32, #tpu.memory_space<vmem>>, vector<1x256xf32>
      %14 = vector.broadcast %13 : vector<1x256xf32> to vector<200x256xf32>
      %15 = arith.addf %12, %14 : vector<200x256xf32>
      %c0_13 = arith.constant 0 : index
      %c0_14 = arith.constant 0 : index
      %16 = vector.load %arg6[%c0_13, %c0_14] : memref<200x256xf32, #tpu.memory_space<vmem>>, vector<200x256xf32>
      tpu.vector_store %arg6[%c0_13, %c0_14], %15 {strides = array<i32>} : memref<200x256xf32, #tpu.memory_space<vmem>>, vector<200x256xf32>,
    } else {
    }
    return
  }
  func.func @transform_0(%arg0: i32, %arg1: i32, %arg2: i32) -> (i32, i32) {
    %c0_i32 = arith.constant 0 : i32
    return %arg0, %arg2 : i32, i32
  }
  func.func @transform_1(%arg0: i32, %arg1: i32, %arg2: i32) -> (i32, i32) {
    %c0_i32 = arith.constant 0 : i32
    return %arg2, %arg1 : i32, i32
  }
  func.func @transform_2(%arg0: i32, %arg1: i32, %arg2: i32) -> (i32, i32) {
    %c0_i32 = arith.constant 0 : i32
    %c0_i32_0 = arith.constant 0 : i32
    return %c0_i32, %arg1 : i32, i32
  }
  func.func @transform_3(%arg0: i32, %arg1: i32, %arg2: i32) -> (i32, i32) {
    %c0_i32 = arith.constant 0 : i32
    return %arg0, %arg1 : i32, i32
  }
}

</mosaic_0001>

<llo_original>
// kernel: matmul_bias.1
$region0: #{matmul_bias.1}
  #allocation0 [shape = 'u32[]', space=smem, size = 0x4, offset = 0x4, fixed_abs, tag = 'smem constant byte address 0x4 - core index']
  #allocation1 [shape = 'u32[144,128]{1,0:T(1,128)}', space=vmem, size = 0x12000, scoped, tag = 'internal scratch']
  #allocation2 [shape = 'f32[200,256]{1,0:T(8,128)}', space=vmem, size = 0x32000, scoped, tag = 'scratch operand']
  %s0 = inlined_call_operand.vmem [shape: bf16[200,384], index: 0, kind: input, shape index: {}]
  %s1 = inlined_call_operand.vmem [shape: bf16[384,256], index: 1, kind: input, shape index: {}]
  %s2 = inlined_call_operand.vmem [shape: f32[1,256], index: 2, kind: input, shape index: {}]
  %s3 = inlined_call_operand.hbm [shape: f32[200,256], index: 3, kind: output, shape index: {}]
  %s4 = sld [smem:[#allocation0]]
  $region94: #{matmul_bias.1} parent=0
    _
  %s6 = ssub.s32 1, %s4
  %s7 = scalar_select 0, %s6, %s4
  $region1: #{matmul_bias.1} parent=0
    #allocation3 [shape = 'u8[102400]{0}', space=vmem, size = 0x19000, scoped, tag = 'input window, operand 0']
    #allocation4 [shape = 'u8[204800]{0}', space=vmem, size = 0x32000, scoped, tag = 'output window, operand 0, single buffered']
    #allocation5 [shape = 's32[2]{0}', space=sflag, size = 0x8, scoped, tag = 'scoped memory for matmul_bias.1']
    %8 = vsyncpa [#allocation5], 0
    loop: start=0, step=1, limit=5
    $region2: #{matmul_bias.1} parent=1 // loop_pre_header
      _
    $region3: #{matmul_bias.1} parent=1 // loop_header
      %s10 = sphi 0, %s14
      %p11 = scmp.ge.s32.totalorder %s10, 5
      %s17 = sphi 0, %s36
      %s18 = sphi 0, %s32
      %s19 = sphi 0, %s28
      %s20 = sphi 0, %s17
      %s21 = sphi 0, %s18
      %s22 = sphi 0, %s19
      %s23 = sphi 0, %s20
      %s24 = sphi 0, %s21
      %s25 = sphi 0, %s22
      %s41 = sphi 0, %s43
      %s44 = sphi 0, %s41
      %s45 = sphi 0, %s44
      %s61 = sphi 0, %s45
      %s69 = sphi 0, %s71
      %s72 = sphi 0, %s69
      %s73 = sphi 0, %s72
      %s89 = sphi 0, %s73
      %s95 = sphi 0, %s97
      %s98 = sphi 0, %s95
      %s99 = sphi 0, %s98
      %s115 = sphi 0, %s99
      %s123 = sphi 0, %s125
      %s126 = sphi 0, %s123
      %s127 = sphi 0, %s126
      %s143 = sphi 0, %s127
    $region4: #{matmul_bias.1} parent=1 // loop_header_branch
      %13 = sbr.rel (%p11) target = $region8
    $region5: #{matmul_bias.1} parent=1 // loop_body
      %s15 = ssub.s32 %s10, 1
      %s16 = ssub.s32 %s10, 2
      %s26 = sadd.s32 1, %s19
      %p27 = scmp.ge.s32.totalorder %s26, 3
      %s28 = scalar_select %p27, 0, %s26
      %s29 = sadd.s32 1, %s18
      %s30 = scalar_select %p27, %s29, %s18
      %p31 = scmp.ge.s32.totalorder %s30, 1
      %s32 = scalar_select %p31, 0, %s30
      %s33 = sadd.s32 1, %s17
      %s34 = scalar_select %p31, %s33, %s17
      %p35 = scmp.ge.s32.totalorder %s34, 1
      %s36 = scalar_select %p35, 0, %s34
      %s37 = ssub.s32 %s17, %s36
      %s38 = ssub.s32 %s19, %s28
      %s39 = sor.u32 %s37, %s38
      %p40 = scmp.eq.s32.totalorder %s39, 0
      %s42 = sadd.s32 %s41, 1
      %s43 = scalar_select %p40, %s41, %s42
      %p46 = pneg %p40
      %p47 = scmp.eq.s32.totalorder %s10, 2
      %p48 = por %p46, %p47
      %p49 = scmp.ne.s32.totalorder %s41, %s44
      %p50 = scmp.eq.s32.totalorder %s10, 0
      %p51 = por %p49, %p50
      %p52 = scmp.ne.s32.totalorder %s41, %s44
      %p53 = scmp.eq.s32.totalorder %s15, 2
      %p54 = por %p52, %p53
      %p55 = scmp.ne.s32.totalorder %s44, %s45
      %p56 = scmp.eq.s32.totalorder %s15, 0
      %p57 = por %p55, %p56
      %p58 = scmp.ne.s32.totalorder %s44, %s45
      %p59 = scmp.eq.s32.totalorder %s16, 2
      %p60 = por %p58, %p59
      %p62 = scmp.ne.s32.totalorder %s45, %s61
      %p63 = scmp.eq.s32.totalorder %s16, 0
      %p64 = por %p62, %p63
      %s65 = ssub.s32 %s19, %s28
      %s66 = ssub.s32 %s18, %s32
      %s67 = sor.u32 %s65, %s66
      %p68 = scmp.eq.s32.totalorder %s67, 0
      %s70 = sadd.s32 %s69, 1
      %s71 = scalar_select %p68, %s69, %s70
      %p74 = pneg %p68
      %p75 = scmp.eq.s32.totalorder %s10, 2
      %p76 = por %p74, %p75
      %p77 = scmp.ne.s32.totalorder %s69, %s72
      %p78 = scmp.eq.s32.totalorder %s10, 0
      %p79 = por %p77, %p78
      %p80 = scmp.ne.s32.totalorder %s69, %s72
      %p81 = scmp.eq.s32.totalorder %s15, 2
      %p82 = por %p80, %p81
      %p83 = scmp.ne.s32.totalorder %s72, %s73
      %p84 = scmp.eq.s32.totalorder %s15, 0
      %p85 = por %p83, %p84
      %p86 = scmp.ne.s32.totalorder %s72, %s73
      %p87 = scmp.eq.s32.totalorder %s16, 2
      %p88 = por %p86, %p87
      %p90 = scmp.ne.s32.totalorder %s73, %s89
      %p91 = scmp.eq.s32.totalorder %s16, 0
      %p92 = por %p90, %p91
      %s93 = ssub.s32 %s18, %s32
      %p94 = scmp.eq.s32.totalorder %s93, 0
      %s96 = sadd.s32 %s95, 1
      %s97 = scalar_select %p94, %s95, %s96
      %p100 = pneg %p94
      %p101 = scmp.eq.s32.totalorder %s10, 2
      %p102 = por %p100, %p101
      %p103 = scmp.ne.s32.totalorder %s95, %s98
      %p104 = scmp.eq.s32.totalorder %s10, 0
      %p105 = por %p103, %p104
      %p106 = scmp.ne.s32.totalorder %s95, %s98
      %p107 = scmp.eq.s32.totalorder %s15, 2
      %p108 = por %p106, %p107
      %p109 = scmp.ne.s32.totalorder %s98, %s99
      %p110 = scmp.eq.s32.totalorder %s15, 0
      %p111 = por %p109, %p110
      %p112 = scmp.ne.s32.totalorder %s98, %s99
      %p113 = scmp.eq.s32.totalorder %s16, 2
      %p114 = por %p112, %p113
      %p116 = scmp.ne.s32.totalorder %s99, %s115
      %p117 = scmp.eq.s32.totalorder %s16, 0
      %p118 = por %p116, %p117
      %s119 = ssub.s32 %s17, %s36
      %s120 = ssub.s32 %s18, %s32
      %s121 = sor.u32 %s119, %s120
      %p122 = scmp.eq.s32.totalorder %s121, 0
      %s124 = sadd.s32 %s123, 1
      %s125 = scalar_select %p122, %s123, %s124
      %p128 = pneg %p122
      %p129 = scmp.eq.s32.totalorder %s10, 2
      %p130 = por %p128, %p129
      %p131 = scmp.ne.s32.totalorder %s123, %s126
      %p132 = scmp.eq.s32.totalorder %s10, 0
      %p133 = por %p131, %p132
      %p134 = scmp.ne.s32.totalorder %s123, %s126
      %p135 = scmp.eq.s32.totalorder %s15, 2
      %p136 = por %p134, %p135
      %p137 = scmp.ne.s32.totalorder %s126, %s127
      %p138 = scmp.eq.s32.totalorder %s15, 0
      %p139 = por %p137, %p138
      %p140 = scmp.ne.s32.totalorder %s126, %s127
      %p141 = scmp.eq.s32.totalorder %s16, 2
      %p142 = por %p140, %p141
      %p144 = scmp.ne.s32.totalorder %s127, %s143
      %p145 = scmp.eq.s32.totalorder %s16, 0
      %p146 = por %p144, %p145
      %p147 = scmp.le.s32.totalorder 1, %s10
      %p148 = scmp.lt.s32.totalorder %s10, 4
      %p149 = pnand %p147, %p148
      %p150 = pneg %p149
      // Predicated region
      $region9: #{matmul_bias.1} parent=5 // pred_check
        _
      $region10: #{matmul_bias.1} parent=5 // pred_check_branch
        %152 = sbr.rel (%p149) target = $region12
      $region11: #{matmul_bias.1} parent=5 // pred_region
        %s153 = ssub.s32 %s10, 1
        // Predicated region
        $region13: #{matmul_bias.1} parent=11 // pred_check
          %p154 = pneg %p111
        $region14: #{matmul_bias.1} parent=11 // pred_check_branch
          %156 = sbr.rel (%p154) target = $region16
        $region15: #{matmul_bias.1} parent=11 // pred_region
          %s157 = smul.u32 2, %s21
          %p158 = scmp.lt.s32.totalorder %s157, 1
          %s159 = scalar_select %p158, %s157, 1
          %s160 = scalar_lea.vmem %s2, %s159
          %s161 = smul.u32 2, %s21
        $region16: #{matmul_bias.1} parent=11 // pred_fallthru
          _
      $region12: #{matmul_bias.1} parent=5 // pred_fallthru
        _
      %p162 = scmp.lt.s32.totalorder %s10, 3
      // Predicated region
      $region17: #{matmul_bias.1} parent=5 // pred_check
        %p163 = pneg %p162
      $region18: #{matmul_bias.1} parent=5 // pred_check_branch
        %165 = sbr.rel (%p163) target = $region20
      $region19: #{matmul_bias.1} parent=5 // pred_region
        // Predicated region
        $region21: #{matmul_bias.1} parent=19 // pred_check
          %p166 = pneg %p51
        $region22: #{matmul_bias.1} parent=19 // pred_check_branch
          %168 = sbr.rel (%p166) target = $region24
        $region23: #{matmul_bias.1} parent=19 // pred_region
          %s169 = sand.u32 %s41, 1
          %s170 = sand.u32 %s41, 1
          %s171 = smul.addr %s170, 100
          %s172 = scalar_lea.vmem [#allocation3], %s171
          %s173 = smul.u32 25, %s17
          %s174 = smul.addr %s173, 3
          %s175 = sadd.s32 %s19, %s174
          %s176 = smul.addr %s175, 4
          %s177 = scalar_lea.vmem %s0, %s176
          // Predicated region
          $region25: #{matmul_bias.1} parent=23 // pred_check
            _
          $region26: #{matmul_bias.1} parent=23 // pred_check_branch
            %179 = sbr.rel (0) target = $region28
          $region27: #{matmul_bias.1} parent=23 // pred_region
            // Predicated region
            $region29: #{matmul_bias.1} parent=27 // pred_check
              _
            $region30: #{matmul_bias.1} parent=27 // pred_check_branch
              %181 = sbr.rel target = $region32
            $region31: #{matmul_bias.1} parent=27 // pred_region
              // Predicated region
              $region44: #{matmul_bias.1} parent=31 // pred_check
                _
              $region45: #{matmul_bias.1} parent=31 // pred_check_branch
                %244 = sbr.rel (0) target = $region47
              $region46: #{matmul_bias.1} parent=31 // pred_region
                loop: start=0, step=1, limit=1
                $region48: #{matmul_bias.1} parent=46 // loop_pre_header
                  _
                $region49: #{matmul_bias.1} parent=46 // loop_header
                  %s246 = sphi 0, %s250
                  %p247 = scmp.ge.s32.totalorder %s246, 1
                  %s251 = sphi %s177, %s177
                  %s252 = sphi %s172, %s172
                $region50: #{matmul_bias.1} parent=46 // loop_header_branch
                  %249 = sbr.rel (%p247) target = $region54
                $region51: #{matmul_bias.1} parent=46 // loop_body
                  _
                $region52: #{matmul_bias.1} parent=46 // loop_footer
                  %s250 = sadd.s32 1, %s246
                $region53: #{matmul_bias.1} parent=46 // loop_footer_branch
                  %245 = sbr.rel target = $region49
                $region54: #{matmul_bias.1} parent=46 // loop_exit
                  _
                loop: start=0, step=1, limit=1
                $region55: #{matmul_bias.1} parent=46 // loop_pre_header
                  _
                $region56: #{matmul_bias.1} parent=46 // loop_header
                  %s255 = sphi 0, %s259
                  %p256 = scmp.ge.s32.totalorder %s255, 1
                  %s260 = sphi %s177, %s177
                  %s261 = sphi %s172, %s172
                $region57: #{matmul_bias.1} parent=46 // loop_header_branch
                  %258 = sbr.rel (%p256) target = $region61
                $region58: #{matmul_bias.1} parent=46 // loop_body
                  %v262 = vld [vmem:[%s260] sm:$0xf]
                  %263 = vst [vmem:[%s261] sm:$0xf] %v262
                  %v264 = vld [vmem:[%s260 + $0xc] sm:$0xf]
                  %265 = vst [vmem:[%s261 + $0x4] sm:$0xf] %v264
                  %v266 = vld [vmem:[%s260 + $0x18] sm:$0xf]
                  %267 = vst [vmem:[%s261 + $0x8] sm:$0xf] %v266
                  %v268 = vld [vmem:[%s260 + $0x24] sm:$0xf]
                  %269 = vst [vmem:[%s261 + $0xc] sm:$0xf] %v268
                  %v270 = vld [vmem:[%s260 + $0x30] sm:$0xf]
                  %271 = vst [vmem:[%s261 + $0x10] sm:$0xf] %v270
                  %v272 = vld [vmem:[%s260 + $0x3c] sm:$0xf]
                  %273 = vst [vmem:[%s261 + $0x14] sm:$0xf] %v272
                  %v274 = vld [vmem:[%s260 + $0x48] sm:$0xf]
                  %275 = vst [vmem:[%s261 + $0x18] sm:$0xf] %v274
                  %v276 = vld [vmem:[%s260 + $0x54] sm:$0xf]
                  %277 = vst [vmem:[%s261 + $0x1c] sm:$0xf] %v276
                  %v278 = vld [vmem:[%s260 + $0x60] sm:$0xf]
                  %279 = vst [vmem:[%s261 + $0x20] sm:$0xf] %v278
                  %v280 = vld [vmem:[%s260 + $0x6c] sm:$0xf]
                  %281 = vst [vmem:[%s261 + $0x24] sm:$0xf] %v280
                  %v282 = vld [vmem:[%s260 + $0x78] sm:$0xf]
                  %283 = vst [vmem:[%s261 + $0x28] sm:$0xf] %v282
                  %v284 = vld [vmem:[%s260 + $0x84] sm:$0xf]
                  %285 = vst [vmem:[%s261 + $0x2c] sm:$0xf] %v284
                  %v286 = vld [vmem:[%s260 + $0x90] sm:$0xf]
                  %287 = vst [vmem:[%s261 + $0x30] sm:$0xf] %v286
                  %v288 = vld [vmem:[%s260 + $0x9c] sm:$0xf]
                  %289 = vst [vmem:[%s261 + $0x34] sm:$0xf] %v288
                  %v290 = vld [vmem:[%s260 + $0xa8] sm:$0xf]
                  %291 = vst [vmem:[%s261 + $0x38] sm:$0xf] %v290
                  %v292 = vld [vmem:[%s260 + $0xb4] sm:$0xf]
                  %293 = vst [vmem:[%s261 + $0x3c] sm:$0xf] %v292
                  %v294 = vld [vmem:[%s260 + $0xc0] sm:$0xf]
                  %295 = vst [vmem:[%s261 + $0x40] sm:$0xf] %v294
                  %v296 = vld [vmem:[%s260 + $0xcc] sm:$0xf]
                  %297 = vst [vmem:[%s261 + $0x44] sm:$0xf] %v296
                  %v298 = vld [vmem:[%s260 + $0xd8] sm:$0xf]
                  %299 = vst [vmem:[%s261 + $0x48] sm:$0xf] %v298
                  %v300 = vld [vmem:[%s260 + $0xe4] sm:$0xf]
                  %301 = vst [vmem:[%s261 + $0x4c] sm:$0xf] %v300
                  %v302 = vld [vmem:[%s260 + $0xf0] sm:$0xf]
                  %303 = vst [vmem:[%s261 + $0x50] sm:$0xf] %v302
                  %v304 = vld [vmem:[%s260 + $0xfc] sm:$0xf]
                  %305 = vst [vmem:[%s261 + $0x54] sm:$0xf] %v304
                  %v306 = vld [vmem:[%s260 + $0x108] sm:$0xf]
                  %307 = vst [vmem:[%s261 + $0x58] sm:$0xf] %v306
                  %v308 = vld [vmem:[%s260 + $0x114] sm:$0xf]
                  %309 = vst [vmem:[%s261 + $0x5c] sm:$0xf] %v308
                  %v310 = vld [vmem:[%s260 + $0x120] sm:$0xf]
                  %311 = vst [vmem:[%s261 + $0x60] sm:$0xf] %v310
                $region59: #{matmul_bias.1} parent=46 // loop_footer
                  %s259 = sadd.s32 1, %s255
                $region60: #{matmul_bias.1} parent=46 // loop_footer_branch
                  %254 = sbr.rel target = $region56
                $region61: #{matmul_bias.1} parent=46 // loop_exit
                  _
              $region47: #{matmul_bias.1} parent=31 // pred_fallthru
                _
            $region32: #{matmul_bias.1} parent=27 // pred_fallthru
              _
            // Predicated region
            $region33: #{matmul_bias.1} parent=27 // pred_check
              _
            $region34: #{matmul_bias.1} parent=27 // pred_check_branch
              %183 = sbr.rel (0) target = $region36
            $region35: #{matmul_bias.1} parent=27 // pred_region
              loop: start=0, step=1, limit=1
              $region37: #{matmul_bias.1} parent=35 // loop_pre_header
                _
              $region38: #{matmul_bias.1} parent=35 // loop_header
                %s186 = sphi 0, %s190
                %p187 = scmp.ge.s32.totalorder %s186, 1
                %s191 = sphi %s177, %s177
                %s192 = sphi %s172, %s172
              $region39: #{matmul_bias.1} parent=35 // loop_header_branch
                %189 = sbr.rel (%p187) target = $region43
              $region40: #{matmul_bias.1} parent=35 // loop_body
                %v193 = vld [vmem:[%s191] sm:$0xf]
                %194 = vst [vmem:[%s192] sm:$0xf] %v193
                %v195 = vld [vmem:[%s191 + $0xc] sm:$0xf]
                %196 = vst [vmem:[%s192 + $0x4] sm:$0xf] %v195
                %v197 = vld [vmem:[%s191 + $0x18] sm:$0xf]
                %198 = vst [vmem:[%s192 + $0x8] sm:$0xf] %v197
                %v199 = vld [vmem:[%s191 + $0x24] sm:$0xf]
                %200 = vst [vmem:[%s192 + $0xc] sm:$0xf] %v199
                %v201 = vld [vmem:[%s191 + $0x30] sm:$0xf]
                %202 = vst [vmem:[%s192 + $0x10] sm:$0xf] %v201
                %v203 = vld [vmem:[%s191 + $0x3c] sm:$0xf]
                %204 = vst [vmem:[%s192 + $0x14] sm:$0xf] %v203
                %v205 = vld [vmem:[%s191 + $0x48] sm:$0xf]
                %206 = vst [vmem:[%s192 + $0x18] sm:$0xf] %v205
                %v207 = vld [vmem:[%s191 + $0x54] sm:$0xf]
                %208 = vst [vmem:[%s192 + $0x1c] sm:$0xf] %v207
                %v209 = vld [vmem:[%s191 + $0x60] sm:$0xf]
                %210 = vst [vmem:[%s192 + $0x20] sm:$0xf] %v209
                %v211 = vld [vmem:[%s191 + $0x6c] sm:$0xf]
                %212 = vst [vmem:[%s192 + $0x24] sm:$0xf] %v211
                %v213 = vld [vmem:[%s191 + $0x78] sm:$0xf]
                %214 = vst [vmem:[%s192 + $0x28] sm:$0xf] %v213
                %v215 = vld [vmem:[%s191 + $0x84] sm:$0xf]
                %216 = vst [vmem:[%s192 + $0x2c] sm:$0xf] %v215
                %v217 = vld [vmem:[%s191 + $0x90] sm:$0xf]
                %218 = vst [vmem:[%s192 + $0x30] sm:$0xf] %v217
                %v219 = vld [vmem:[%s191 + $0x9c] sm:$0xf]
                %220 = vst [vmem:[%s192 + $0x34] sm:$0xf] %v219
                %v221 = vld [vmem:[%s191 + $0xa8] sm:$0xf]
                %222 = vst [vmem:[%s192 + $0x38] sm:$0xf] %v221
                %v223 = vld [vmem:[%s191 + $0xb4] sm:$0xf]
                %224 = vst [vmem:[%s192 + $0x3c] sm:$0xf] %v223
                %v225 = vld [vmem:[%s191 + $0xc0] sm:$0xf]
                %226 = vst [vmem:[%s192 + $0x40] sm:$0xf] %v225
                %v227 = vld [vmem:[%s191 + $0xcc] sm:$0xf]
                %228 = vst [vmem:[%s192 + $0x44] sm:$0xf] %v227
                %v229 = vld [vmem:[%s191 + $0xd8] sm:$0xf]
                %230 = vst [vmem:[%s192 + $0x48] sm:$0xf] %v229
                %v231 = vld [vmem:[%s191 + $0xe4] sm:$0xf]
                %232 = vst [vmem:[%s192 + $0x4c] sm:$0xf] %v231
                %v233 = vld [vmem:[%s191 + $0xf0] sm:$0xf]
                %234 = vst [vmem:[%s192 + $0x50] sm:$0xf] %v233
                %v235 = vld [vmem:[%s191 + $0xfc] sm:$0xf]
                %236 = vst [vmem:[%s192 + $0x54] sm:$0xf] %v235
                %v237 = vld [vmem:[%s191 + $0x108] sm:$0xf]
                %238 = vst [vmem:[%s192 + $0x58] sm:$0xf] %v237
                %v239 = vld [vmem:[%s191 + $0x114] sm:$0xf]
                %240 = vst [vmem:[%s192 + $0x5c] sm:$0xf] %v239
                %v241 = vld [vmem:[%s191 + $0x120] sm:$0xf]
                %242 = vst [vmem:[%s192 + $0x60] sm:$0xf] %v241
              $region41: #{matmul_bias.1} parent=35 // loop_footer
                %s190 = sadd.s32 1, %s186
              $region42: #{matmul_bias.1} parent=35 // loop_footer_branch
                %185 = sbr.rel target = $region38
              $region43: #{matmul_bias.1} parent=35 // loop_exit
                _
            $region36: #{matmul_bias.1} parent=27 // pred_fallthru
              _
          $region28: #{matmul_bias.1} parent=23 // pred_fallthru
            _
          %312 = vnop
        $region24: #{matmul_bias.1} parent=19 // pred_fallthru
          _
        // Predicated region
        $region62: #{matmul_bias.1} parent=19 // pred_check
          %p313 = pneg %p79
        $region63: #{matmul_bias.1} parent=19 // pred_check_branch
          %315 = sbr.rel (%p313) target = $region65
        $region64: #{matmul_bias.1} parent=19 // pred_region
          %s316 = smul.u32 16, %s19
          %s317 = smul.u32 2, %s18
          %p318 = scmp.lt.s32.totalorder %s316, 47
          %s319 = scalar_select %p318, %s316, 47
          %p320 = scmp.lt.s32.totalorder %s317, 1
          %s321 = scalar_select %p320, %s317, 1
          %s322 = smul.addr %s319, 2
          %s323 = sadd.s32 %s321, %s322
          %s324 = smul.addr %s323, 4
          %s325 = scalar_lea.vmem %s1, %s324
          %s326 = smul.u32 16, %s19
          %s327 = smul.u32 2, %s18
        $region65: #{matmul_bias.1} parent=19 // pred_fallthru
          _
      $region20: #{matmul_bias.1} parent=5 // pred_fallthru
        _
      %p328 = scmp.le.s32.totalorder 1, %s10
      %p329 = scmp.lt.s32.totalorder %s10, 4
      %p330 = pnand %p328, %p329
      %p331 = pneg %p330
      // Predicated region
      $region66: #{matmul_bias.1} parent=5 // pred_check
        _
      $region67: #{matmul_bias.1} parent=5 // pred_check_branch
        %333 = sbr.rel (%p330) target = $region69
      $region68: #{matmul_bias.1} parent=5 // pred_region
        %s334 = ssub.s32 %s10, 1
        %s335 = sand.u32 %s44, 1
        %s336 = sand.u32 %s44, 1
        %s337 = smul.addr %s336, 100
        %s338 = scalar_lea.vmem [#allocation3], %s337
        // Predicated region
        $region70: #{matmul_bias.1} parent=68 // pred_check
          %p339 = pneg %p57
        $region71: #{matmul_bias.1} parent=68 // pred_check_branch
          %341 = sbr.rel (%p339) target = $region73
        $region72: #{matmul_bias.1} parent=68 // pred_region
          _
        $region73: #{matmul_bias.1} parent=68 // pred_fallthru
          _
        %s342 = sand.u32 %s44, 1
        %s343 = sand.u32 %s44, 1
        %s344 = smul.addr %s343, 100
        %s345 = scalar_lea.vmem [#allocation3], %s344
        %p346 = pneg %p57
        %p347 = pneg %p54
        %s348 = smul.u32 16, %s22
        %s349 = smul.u32 2, %s21
        %p350 = scmp.lt.s32.totalorder %s348, 47
        %s351 = scalar_select %p350, %s348, 47
        %p352 = scmp.lt.s32.totalorder %s349, 1
        %s353 = scalar_select %p352, %s349, 1
        %s354 = smul.addr %s351, 2
        %s355 = sadd.s32 %s353, %s354
        %s356 = smul.addr %s355, 4
        %s357 = scalar_lea.vmem %s1, %s356
        %p358 = pneg %p85
        %p359 = pneg %p82
        %s360 = smul.u32 2, %s21
        %p361 = scmp.lt.s32.totalorder %s360, 1
        %s362 = scalar_select %p361, %s360, 1
        %s363 = scalar_lea.vmem %s2, %s362
        %p364 = pneg %p111
        %p365 = pneg %p108
        %p366 = pneg %p139
        %p367 = pneg %p136
        %s368 = smul.u32 25, %s20
        %s369 = smul.u32 16, %s22
        %s370 = smul.u32 2, %s21
        %p371 = scmp.lt.s32.totalorder %s369, 47
        %s372 = scalar_select %p371, %s369, 47
        %p373 = scmp.lt.s32.totalorder %s370, 1
        %s374 = scalar_select %p373, %s370, 1
        %s375 = smul.addr %s372, 2
        %s376 = sadd.s32 %s374, %s375
        %s377 = smul.addr %s376, 4
        %s378 = scalar_lea.vmem %s1, %s377
        %s379 = smul.u32 16, %s22
        %s380 = smul.u32 2, %s21
        %s381 = smul.u32 2, %s21
        %p382 = scmp.lt.s32.totalorder %s381, 1
        %s383 = scalar_select %p382, %s381, 1
        %s384 = scalar_lea.vmem %s2, %s383
        %s385 = smul.u32 2, %s21
        %s386 = smul.u32 25, %s20
        %s387 = smul.u32 2, %s21
        %p389 = scmp.eq.s32.totalorder %s22, 0
        // Predicated region
        $region74: #{matmul_bias.1} parent=68 // pred_check
          %p390 = pneg %p389
        $region75: #{matmul_bias.1} parent=68 // pred_check_branch
          %392 = sbr.rel (%p390) target = $region77
        $region76: #{matmul_bias.1} parent=68 // pred_region
          %393 = vst [vmem:[#allocation2] sm:$0xff] 0.0
          %394 = vst [vmem:[#allocation2 + $0x8] sm:$0xff] 0.0
          %395 = vst [vmem:[#allocation2 + $0x10] sm:$0xff] 0.0
          %396 = vst [vmem:[#allocation2 + $0x18] sm:$0xff] 0.0
          %397 = vst [vmem:[#allocation2 + $0x20] sm:$0xff] 0.0
          %398 = vst [vmem:[#allocation2 + $0x28] sm:$0xff] 0.0
          %399 = vst [vmem:[#allocation2 + $0x30] sm:$0xff] 0.0
          %400 = vst [vmem:[#allocation2 + $0x38] sm:$0xff] 0.0
          %401 = vst [vmem:[#allocation2 + $0x40] sm:$0xff] 0.0
          %402 = vst [vmem:[#allocation2 + $0x48] sm:$0xff] 0.0
          %403 = vst [vmem:[#allocation2 + $0x50] sm:$0xff] 0.0
          %404 = vst [vmem:[#allocation2 + $0x58] sm:$0xff] 0.0
          %405 = vst [vmem:[#allocation2 + $0x60] sm:$0xff] 0.0
          %406 = vst [vmem:[#allocation2 + $0x68] sm:$0xff] 0.0
          %407 = vst [vmem:[#allocation2 + $0x70] sm:$0xff] 0.0
          %408 = vst [vmem:[#allocation2 + $0x78] sm:$0xff] 0.0
          %409 = vst [vmem:[#allocation2 + $0x80] sm:$0xff] 0.0
          %410 = vst [vmem:[#allocation2 + $0x88] sm:$0xff] 0.0
          %411 = vst [vmem:[#allocation2 + $0x90] sm:$0xff] 0.0
          %412 = vst [vmem:[#allocation2 + $0x98] sm:$0xff] 0.0
          %413 = vst [vmem:[#allocation2 + $0xa0] sm:$0xff] 0.0
          %414 = vst [vmem:[#allocation2 + $0xa8] sm:$0xff] 0.0
          %415 = vst [vmem:[#allocation2 + $0xb0] sm:$0xff] 0.0
          %416 = vst [vmem:[#allocation2 + $0xb8] sm:$0xff] 0.0
          %417 = vst [vmem:[#allocation2 + $0xc0] sm:$0xff] 0.0
          %418 = vst [vmem:[#allocation2 + $0xc8] sm:$0xff] 0.0
          %419 = vst [vmem:[#allocation2 + $0xd0] sm:$0xff] 0.0
          %420 = vst [vmem:[#allocation2 + $0xd8] sm:$0xff] 0.0
          %421 = vst [vmem:[#allocation2 + $0xe0] sm:$0xff] 0.0
          %422 = vst [vmem:[#allocation2 + $0xe8] sm:$0xff] 0.0
          %423 = vst [vmem:[#allocation2 + $0xf0] sm:$0xff] 0.0
          %424 = vst [vmem:[#allocation2 + $0xf8] sm:$0xff] 0.0
          %425 = vst [vmem:[#allocation2 + $0x100] sm:$0xff] 0.0
          %426 = vst [vmem:[#allocation2 + $0x108] sm:$0xff] 0.0
          %427 = vst [vmem:[#allocation2 + $0x110] sm:$0xff] 0.0
          %428 = vst [vmem:[#allocation2 + $0x118] sm:$0xff] 0.0
          %429 = vst [vmem:[#allocation2 + $0x120] sm:$0xff] 0.0
          %430 = vst [vmem:[#allocation2 + $0x128] sm:$0xff] 0.0
          %431 = vst [vmem:[#allocation2 + $0x130] sm:$0xff] 0.0
          %432 = vst [vmem:[#allocation2 + $0x138] sm:$0xff] 0.0
          %433 = vst [vmem:[#allocation2 + $0x140] sm:$0xff] 0.0
          %434 = vst [vmem:[#allocation2 + $0x148] sm:$0xff] 0.0
          %435 = vst [vmem:[#allocation2 + $0x150] sm:$0xff] 0.0
          %436 = vst [vmem:[#allocation2 + $0x158] sm:$0xff] 0.0
          %437 = vst [vmem:[#allocation2 + $0x160] sm:$0xff] 0.0
          %438 = vst [vmem:[#allocation2 + $0x168] sm:$0xff] 0.0
          %439 = vst [vmem:[#allocation2 + $0x170] sm:$0xff] 0.0
          %440 = vst [vmem:[#allocation2 + $0x178] sm:$0xff] 0.0
          %441 = vst [vmem:[#allocation2 + $0x180] sm:$0xff] 0.0
          %442 = vst [vmem:[#allocation2 + $0x188] sm:$0xff] 0.0
        $region77: #{matmul_bias.1} parent=68 // pred_fallthru
          _
        %v443 = vld [vmem:[#allocation2] sm:$0xff]
        %v444 = vld [vmem:[#allocation2 + $0x8] sm:$0xff]
        %v445 = vld [vmem:[#allocation2 + $0x10] sm:$0xff]
        %v446 = vld [vmem:[#allocation2 + $0x18] sm:$0xff]
        %v447 = vld [vmem:[#allocation2 + $0x20] sm:$0xff]
        %v448 = vld [vmem:[#allocation2 + $0x28] sm:$0xff]
        %v449 = vld [vmem:[#allocation2 + $0x30] sm:$0xff]
        %v450 = vld [vmem:[#allocation2 + $0x38] sm:$0xff]
        %v451 = vld [vmem:[#allocation2 + $0x40] sm:$0xff]
        %v452 = vld [vmem:[#allocation2 + $0x48] sm:$0xff]
        %v453 = vld [vmem:[#allocation2 + $0x50] sm:$0xff]
        %v454 = vld [vmem:[#allocation2 + $0x58] sm:$0xff]
        %v455 = vld [vmem:[#allocation2 + $0x60] sm:$0xff]
        %v456 = vld [vmem:[#allocation2 + $0x68] sm:$0xff]
        %v457 = vld [vmem:[#allocation2 + $0x70] sm:$0xff]
        %v458 = vld [vmem:[#allocation2 + $0x78] sm:$0xff]
        %v459 = vld [vmem:[#allocation2 + $0x80] sm:$0xff]
        %v460 = vld [vmem:[#allocation2 + $0x88] sm:$0xff]
        %v461 = vld [vmem:[#allocation2 + $0x90] sm:$0xff]
        %v462 = vld [vmem:[#allocation2 + $0x98] sm:$0xff]
        %v463 = vld [vmem:[#allocation2 + $0xa0] sm:$0xff]
        %v464 = vld [vmem:[#allocation2 + $0xa8] sm:$0xff]
        %v465 = vld [vmem:[#allocation2 + $0xb0] sm:$0xff]
        %v466 = vld [vmem:[#allocation2 + $0xb8] sm:$0xff]
        %v467 = vld [vmem:[#allocation2 + $0xc0] sm:$0xff]
        %v468 = vld [vmem:[#allocation2 + $0xc8] sm:$0xff]
        %v469 = vld [vmem:[#allocation2 + $0xd0] sm:$0xff]
        %v470 = vld [vmem:[#allocation2 + $0xd8] sm:$0xff]
        %v471 = vld [vmem:[#allocation2 + $0xe0] sm:$0xff]
        %v472 = vld [vmem:[#allocation2 + $0xe8] sm:$0xff]
        %v473 = vld [vmem:[#allocation2 + $0xf0] sm:$0xff]
        %v474 = vld [vmem:[#allocation2 + $0xf8] sm:$0xff]
        %v475 = vld [vmem:[#allocation2 + $0x100] sm:$0xff]
        %v476 = vld [vmem:[#allocation2 + $0x108] sm:$0xff]
        %v477 = vld [vmem:[#allocation2 + $0x110] sm:$0xff]
        %v478 = vld [vmem:[#allocation2 + $0x118] sm:$0xff]
        %v479 = vld [vmem:[#allocation2 + $0x120] sm:$0xff]
        %v480 = vld [vmem:[#allocation2 + $0x128] sm:$0xff]
        %v481 = vld [vmem:[#allocation2 + $0x130] sm:$0xff]
        %v482 = vld [vmem:[#allocation2 + $0x138] sm:$0xff]
        %v483 = vld [vmem:[#allocation2 + $0x140] sm:$0xff]
        %v484 = vld [vmem:[#allocation2 + $0x148] sm:$0xff]
        %v485 = vld [vmem:[#allocation2 + $0x150] sm:$0xff]
        %v486 = vld [vmem:[#allocation2 + $0x158] sm:$0xff]
        %v487 = vld [vmem:[#allocation2 + $0x160] sm:$0xff]
        %v488 = vld [vmem:[#allocation2 + $0x168] sm:$0xff]
        %v489 = vld [vmem:[#allocation2 + $0x170] sm:$0xff]
        %v490 = vld [vmem:[#allocation2 + $0x178] sm:$0xff]
        %v491 = vld [vmem:[#allocation2 + $0x180] sm:$0xff]
        %v492 = vld [vmem:[#allocation2 + $0x188] sm:$0xff]
        %v493 = vld [vmem:[%s338] sm:$0xf]
        %v494 = vld [vmem:[%s338 + $0x4] sm:$0xf]
        %v495 = vld [vmem:[%s338 + $0x8] sm:$0xf]
        %v496 = vld [vmem:[%s338 + $0xc] sm:$0xf]
        %v497 = vld [vmem:[%s338 + $0x10] sm:$0xf]
        %v498 = vld [vmem:[%s338 + $0x14] sm:$0xf]
        %v499 = vld [vmem:[%s338 + $0x18] sm:$0xf]
        %v500 = vld [vmem:[%s338 + $0x1c] sm:$0xf]
        %v501 = vld [vmem:[%s338 + $0x20] sm:$0xf]
        %v502 = vld [vmem:[%s338 + $0x24] sm:$0xf]
        %v503 = vld [vmem:[%s338 + $0x28] sm:$0xf]
        %v504 = vld [vmem:[%s338 + $0x2c] sm:$0xf]
        %v505 = vld [vmem:[%s338 + $0x30] sm:$0xf]
        %v506 = vld [vmem:[%s338 + $0x34] sm:$0xf]
        %v507 = vld [vmem:[%s338 + $0x38] sm:$0xf]
        %v508 = vld [vmem:[%s338 + $0x3c] sm:$0xf]
        %v509 = vld [vmem:[%s338 + $0x40] sm:$0xf]
        %v510 = vld [vmem:[%s338 + $0x44] sm:$0xf]
        %v511 = vld [vmem:[%s338 + $0x48] sm:$0xf]
        %v512 = vld [vmem:[%s338 + $0x4c] sm:$0xf]
        %v513 = vld [vmem:[%s338 + $0x50] sm:$0xf]
        %v514 = vld [vmem:[%s338 + $0x54] sm:$0xf]
        %v515 = vld [vmem:[%s338 + $0x58] sm:$0xf]
        %v516 = vld [vmem:[%s338 + $0x5c] sm:$0xf]
        %v517 = vld [vmem:[%s338 + $0x60] sm:$0xf]
        %v518 = vld [vmem:[%s378] sm:$0xff]
        %v519 = vld [vmem:[%s378 + $0x8] sm:$0xff]
        %v520 = vld [vmem:[%s378 + $0x10] sm:$0xff]
        %v521 = vld [vmem:[%s378 + $0x18] sm:$0xff]
        %v522 = vld [vmem:[%s378 + $0x20] sm:$0xff]
        %v523 = vld [vmem:[%s378 + $0x28] sm:$0xff]
        %v524 = vld [vmem:[%s378 + $0x30] sm:$0xff]
        %v525 = vld [vmem:[%s378 + $0x38] sm:$0xff]
        %v526 = vld [vmem:[%s378 + $0x40] sm:$0xff]
        %v527 = vld [vmem:[%s378 + $0x48] sm:$0xff]
        %v528 = vld [vmem:[%s378 + $0x50] sm:$0xff]
        %v529 = vld [vmem:[%s378 + $0x58] sm:$0xff]
        %v530 = vld [vmem:[%s378 + $0x60] sm:$0xff]
        %v531 = vld [vmem:[%s378 + $0x68] sm:$0xff]
        %v532 = vld [vmem:[%s378 + $0x70] sm:$0xff]
        %v533 = vld [vmem:[%s378 + $0x78] sm:$0xff]
        %v559 = vunpack.c.l.b16 %v493
        %v560 = vunpack.c.l.b16 %v494
        %v561 = vunpack.c.l.b16 %v495
        %v562 = vunpack.c.l.b16 %v496
        %v563 = vunpack.c.l.b16 %v497
        %v564 = vunpack.c.l.b16 %v498
        %v565 = vunpack.c.l.b16 %v499
        %v566 = vunpack.c.l.b16 %v500
        %v567 = vunpack.c.l.b16 %v501
        %v568 = vunpack.c.l.b16 %v502
        %v569 = vunpack.c.l.b16 %v503
        %v570 = vunpack.c.l.b16 %v504
        %v571 = vunpack.c.l.b16 %v505
        %v572 = vunpack.c.l.b16 %v506
        %v573 = vunpack.c.l.b16 %v507
        %v574 = vunpack.c.l.b16 %v508
        %v575 = vunpack.c.l.b16 %v509
        %v576 = vunpack.c.l.b16 %v510
        %v577 = vunpack.c.l.b16 %v511
        %v578 = vunpack.c.l.b16 %v512
        %v579 = vunpack.c.l.b16 %v513
        %v580 = vunpack.c.l.b16 %v514
        %v581 = vunpack.c.l.b16 %v515
        %v582 = vunpack.c.l.b16 %v516
        %v583 = vunpack.c.l.b16 %v517
        %v584 = vpack.c.b16 %v560, %v559
        %v585 = vpack.c.b16 %v562, %v561
        %v586 = vpack.c.b16 %v564, %v563
        %v587 = vpack.c.b16 %v566, %v565
        %v588 = vpack.c.b16 %v568, %v567
        %v589 = vpack.c.b16 %v570, %v569
        %v590 = vpack.c.b16 %v572, %v571
        %v591 = vpack.c.b16 %v574, %v573
        %v592 = vpack.c.b16 %v576, %v575
        %v593 = vpack.c.b16 %v578, %v577
        %v594 = vpack.c.b16 %v580, %v579
        %v595 = vpack.c.b16 %v582, %v581
        %v596 = vpack.c.b16 %v583, %v583
        %v626 = vunpack.c.l.b16 %v518
        %v627 = vunpack.c.h.b16 %v518
        %v628 = vunpack.c.l.b16 %v519
        %v629 = vunpack.c.h.b16 %v519
        %v630 = vunpack.c.l.b16 %v520
        %v631 = vunpack.c.h.b16 %v520
        %v632 = vunpack.c.l.b16 %v521
        %v633 = vunpack.c.h.b16 %v521
        %v634 = vunpack.c.l.b16 %v522
        %v635 = vunpack.c.h.b16 %v522
        %v636 = vunpack.c.l.b16 %v523
        %v637 = vunpack.c.h.b16 %v523
        %v638 = vunpack.c.l.b16 %v524
        %v639 = vunpack.c.h.b16 %v524
        %v640 = vunpack.c.l.b16 %v525
        %v641 = vunpack.c.h.b16 %v525
        %v642 = vunpack.c.l.b16 %v526
        %v643 = vunpack.c.h.b16 %v526
        %v644 = vunpack.c.l.b16 %v527
        %v645 = vunpack.c.h.b16 %v527
        %v646 = vunpack.c.l.b16 %v528
        %v647 = vunpack.c.h.b16 %v528
        %v648 = vunpack.c.l.b16 %v529
        %v649 = vunpack.c.h.b16 %v529
        %v650 = vunpack.c.l.b16 %v530
        %v651 = vunpack.c.h.b16 %v530
        %v652 = vunpack.c.l.b16 %v531
        %v653 = vunpack.c.h.b16 %v531
        %v654 = vunpack.c.l.b16 %v532
        %v655 = vunpack.c.h.b16 %v532
        %v656 = vunpack.c.l.b16 %v533
        %v657 = vunpack.c.h.b16 %v533
        %v658 = vpack.c.b16 %v628, %v626
        %v659 = vpack.c.b16 %v629, %v627
        %v660 = vpack.c.b16 %v632, %v630
        %v661 = vpack.c.b16 %v633, %v631
        %v662 = vpack.c.b16 %v636, %v634
        %v663 = vpack.c.b16 %v637, %v635
        %v664 = vpack.c.b16 %v640, %v638
        %v665 = vpack.c.b16 %v641, %v639
        %v666 = vpack.c.b16 %v644, %v642
        %v667 = vpack.c.b16 %v645, %v643
        %v668 = vpack.c.b16 %v648, %v646
        %v669 = vpack.c.b16 %v649, %v647
        %v670 = vpack.c.b16 %v652, %v650
        %v671 = vpack.c.b16 %v653, %v651
        %v672 = vpack.c.b16 %v656, %v654
        %v673 = vpack.c.b16 %v657, %v655
        %690 = vmatprep.subr.bf16.mxu0 %v659
        %691 = vmatpush1.bf16.msra.mxu0 %v658
        %692 = vmatprep.subr.bf16.mxu0 %v661
        %693 = vmatpush1.bf16.msra.mxu0 %v660
        %694 = vmatprep.subr.bf16.mxu0 %v663
        %695 = vmatpush1.bf16.msra.mxu0 %v662
        %696 = vmatprep.subr.bf16.mxu0 %v665
        %697 = vmatpush1.bf16.msra.mxu0 %v664
        %698 = vmatprep.subr.bf16.mxu0 %v667
        %699 = vmatpush1.bf16.msra.mxu0 %v666
        %700 = vmatprep.subr.bf16.mxu0 %v669
        %701 = vmatpush1.bf16.msra.mxu0 %v668
        %702 = vmatprep.subr.bf16.mxu0 %v671
        %703 = vmatpush1.bf16.msra.mxu0 %v670
        %704 = vmatprep.subr.bf16.mxu0 %v673
        %705 = vmatpush1.bf16.msra.mxu0 %v672
        %706 = vmatprep.subr.bf16.mxu0 0
        %707 = vmatpush1.bf16.msra.mxu0 0
        %708 = vmatprep.subr.bf16.mxu0 0
        %709 = vmatpush1.bf16.msra.mxu0 0
        %710 = vmatprep.subr.bf16.mxu0 0
        %711 = vmatpush1.bf16.msra.mxu0 0
        %712 = vmatprep.subr.bf16.mxu0 0
        %713 = vmatpush1.bf16.msra.mxu0 0
        %714 = vmatprep.subr.bf16.mxu0 0
        %715 = vmatpush1.bf16.msra.mxu0 0
        %716 = vmatprep.subr.bf16.mxu0 0
        %717 = vmatpush1.bf16.msra.mxu0 0
        %718 = vmatprep.subr.bf16.mxu0 0
        %719 = vmatpush1.bf16.msra.mxu0 0
        %720 = vmatprep.subr.bf16.mxu0 0
        %721 = vmatpush1.bf16.msra.mxu0 0
        %722 = vmatprep.mubr.bf16.mxu0 0
        %723 = vmatmul.mubr.bf16.gmra.mrb[0].mxu0 %v584
        %v724 = vpop.f32.mrb[0].mxu0
        %v725 = vadd.f32 0.0, %v724
        %v726 = vpop.f32.mrb[0].mxu0
        %v727 = vadd.f32 0.0, %v726
        %v728 = vpop.f32.mrb[0].mxu0
        %v729 = vadd.f32 0.0, %v728
        %v730 = vpop.f32.mrb[0].mxu0
        %v731 = vadd.f32 0.0, %v730
        %732 = vmatprep.mubr.bf16.mxu0 0
        %733 = vmatmul.mubr.bf16.gmra.mrb[0].mxu0 %v585
        %v734 = vpop.f32.mrb[0].mxu0
        %v735 = vadd.f32 0.0, %v734
        %v736 = vpop.f32.mrb[0].mxu0
        %v737 = vadd.f32 0.0, %v736
        %v738 = vpop.f32.mrb[0].mxu0
        %v739 = vadd.f32 0.0, %v738
        %v740 = vpop.f32.mrb[0].mxu0
        %v741 = vadd.f32 0.0, %v740
        %742 = vmatprep.mubr.bf16.mxu0 0
        %743 = vmatmul.mubr.bf16.gmra.mrb[0].mxu0 %v586
        %v744 = vpop.f32.mrb[0].mxu0
        %v745 = vadd.f32 0.0, %v744
        %v746 = vpop.f32.mrb[0].mxu0
        %v747 = vadd.f32 0.0, %v746
        %v748 = vpop.f32.mrb[0].mxu0
        %v749 = vadd.f32 0.0, %v748
        %v750 = vpop.f32.mrb[0].mxu0
        %v751 = vadd.f32 0.0, %v750
        %752 = vmatprep.mubr.bf16.mxu0 0
        %753 = vmatmul.mubr.bf16.gmra.mrb[0].mxu0 %v587
        %v754 = vpop.f32.mrb[0].mxu0
        %v755 = vadd.f32 0.0, %v754
        %v756 = vpop.f32.mrb[0].mxu0
        %v757 = vadd.f32 0.0, %v756
        %v758 = vpop.f32.mrb[0].mxu0
        %v759 = vadd.f32 0.0, %v758
        %v760 = vpop.f32.mrb[0].mxu0
        %v761 = vadd.f32 0.0, %v760
        %762 = vmatprep.mubr.bf16.mxu0 0
        %763 = vmatmul.mubr.bf16.gmra.mrb[0].mxu0 %v588
        %v764 = vpop.f32.mrb[0].mxu0
        %v765 = vadd.f32 0.0, %v764
        %v766 = vpop.f32.mrb[0].mxu0
        %v767 = vadd.f32 0.0, %v766
        %v768 = vpop.f32.mrb[0].mxu0
        %v769 = vadd.f32 0.0, %v768
        %v770 = vpop.f32.mrb[0].mxu0
        %v771 = vadd.f32 0.0, %v770
        %772 = vmatprep.mubr.bf16.mxu0 0
        %773 = vmatmul.mubr.bf16.gmra.mrb[0].mxu0 %v589
        %v774 = vpop.f32.mrb[0].mxu0
        %v775 = vadd.f32 0.0, %v774
        %v776 = vpop.f32.mrb[0].mxu0
        %v777 = vadd.f32 0.0, %v776
        %v778 = vpop.f32.mrb[0].mxu0
        %v779 = vadd.f32 0.0, %v778
        %v780 = vpop.f32.mrb[0].mxu0
        %v781 = vadd.f32 0.0, %v780
        %782 = vmatprep.mubr.bf16.mxu0 0
        %783 = vmatmul.mubr.bf16.gmra.mrb[0].mxu0 %v590
        %v784 = vpop.f32.mrb[0].mxu0
        %v785 = vadd.f32 0.0, %v784
        %v786 = vpop.f32.mrb[0].mxu0
        %v787 = vadd.f32 0.0, %v786
        %v788 = vpop.f32.mrb[0].mxu0
        %v789 = vadd.f32 0.0, %v788
        %v790 = vpop.f32.mrb[0].mxu0
        %v791 = vadd.f32 0.0, %v790
        %792 = vmatprep.mubr.bf16.mxu0 0
        %793 = vmatmul.mubr.bf16.gmra.mrb[0].mxu0 %v591
        %v794 = vpop.f32.mrb[0].mxu0
        %v795 = vadd.f32 0.0, %v794
        %v796 = vpop.f32.mrb[0].mxu0
        %v797 = vadd.f32 0.0, %v796
        %v798 = vpop.f32.mrb[0].mxu0
        %v799 = vadd.f32 0.0, %v798
        %v800 = vpop.f32.mrb[0].mxu0
        %v801 = vadd.f32 0.0, %v800
        %802 = vmatprep.mubr.bf16.mxu0 0
        %803 = vmatmul.mubr.bf16.gmra.mrb[0].mxu0 %v592
        %v804 = vpop.f32.mrb[0].mxu0
        %v805 = vadd.f32 0.0, %v804
        %v806 = vpop.f32.mrb[0].mxu0
        %v807 = vadd.f32 0.0, %v806
        %v808 = vpop.f32.mrb[0].mxu0
        %v809 = vadd.f32 0.0, %v808
        %v810 = vpop.f32.mrb[0].mxu0
        %v811 = vadd.f32 0.0, %v810
        %812 = vmatprep.mubr.bf16.mxu0 0
        %813 = vmatmul.mubr.bf16.gmra.mrb[0].mxu0 %v593
        %v814 = vpop.f32.mrb[0].mxu0
        %v815 = vadd.f32 0.0, %v814
        %v816 = vpop.f32.mrb[0].mxu0
        %v817 = vadd.f32 0.0, %v816
        %v818 = vpop.f32.mrb[0].mxu0
        %v819 = vadd.f32 0.0, %v818
        %v820 = vpop.f32.mrb[0].mxu0
        %v821 = vadd.f32 0.0, %v820
        %822 = vmatprep.mubr.bf16.mxu0 0
        %823 = vmatmul.mubr.bf16.gmra.mrb[0].mxu0 %v594
        %v824 = vpop.f32.mrb[0].mxu0
        %v825 = vadd.f32 0.0, %v824
        %v826 = vpop.f32.mrb[0].mxu0
        %v827 = vadd.f32 0.0, %v826
        %v828 = vpop.f32.mrb[0].mxu0
        %v829 = vadd.f32 0.0, %v828
        %v830 = vpop.f32.mrb[0].mxu0
        %v831 = vadd.f32 0.0, %v830
        %832 = vmatprep.mubr.bf16.mxu0 0
        %833 = vmatmul.mubr.bf16.gmra.mrb[0].mxu0 %v595
        %v834 = vpop.f32.mrb[0].mxu0
        %v835 = vadd.f32 0.0, %v834
        %v836 = vpop.f32.mrb[0].mxu0
        %v837 = vadd.f32 0.0, %v836
        %v838 = vpop.f32.mrb[0].mxu0
        %v839 = vadd.f32 0.0, %v838
        %v840 = vpop.f32.mrb[0].mxu0
        %v841 = vadd.f32 0.0, %v840
        %842 = vmatprep.mubr.bf16.mxu0 0
        %843 = vmatmul.mubr.bf16.gmra.mrb[0].mxu0 %v596
        %v844 = vpop.f32.mrb[0].mxu0
        %v845 = vadd.f32 0.0, %v844
        %v846 = vpop.f32.mrb[0].mxu0
        %v847 = vadd.f32 0.0, %v846
        %v848 = vpop.f32.mrb[0].mxu0
        %v849 = vpop.f32.mrb[0].mxu0
        %850 = vdwg.mxu0
        %v851 = vadd.f32 %v443, %v725
        %v852 = vadd.f32 %v444, %v727
        %v853 = vadd.f32 %v445, %v729
        %v854 = vadd.f32 %v446, %v731
        %v855 = vadd.f32 %v447, %v735
        %v856 = vadd.f32 %v448, %v737
        %v857 = vadd.f32 %v449, %v739
        %v858 = vadd.f32 %v450, %v741
        %v859 = vadd.f32 %v451, %v745
        %v860 = vadd.f32 %v452, %v747
        %v861 = vadd.f32 %v453, %v749
        %v862 = vadd.f32 %v454, %v751
        %v863 = vadd.f32 %v455, %v755
        %v864 = vadd.f32 %v456, %v757
        %v865 = vadd.f32 %v457, %v759
        %v866 = vadd.f32 %v458, %v761
        %v867 = vadd.f32 %v459, %v765
        %v868 = vadd.f32 %v460, %v767
        %v869 = vadd.f32 %v461, %v769
        %v870 = vadd.f32 %v462, %v771
        %v871 = vadd.f32 %v463, %v775
        %v872 = vadd.f32 %v464, %v777
        %v873 = vadd.f32 %v465, %v779
        %v874 = vadd.f32 %v466, %v781
        %v875 = vadd.f32 %v467, %v785
        %v876 = vadd.f32 %v468, %v787
        %v877 = vadd.f32 %v469, %v789
        %v878 = vadd.f32 %v470, %v791
        %v879 = vadd.f32 %v471, %v795
        %v880 = vadd.f32 %v472, %v797
        %v881 = vadd.f32 %v473, %v799
        %v882 = vadd.f32 %v474, %v801
        %v883 = vadd.f32 %v475, %v805
        %v884 = vadd.f32 %v476, %v807
        %v885 = vadd.f32 %v477, %v809
        %v886 = vadd.f32 %v478, %v811
        %v887 = vadd.f32 %v479, %v815
        %v888 = vadd.f32 %v480, %v817
        %v889 = vadd.f32 %v481, %v819
        %v890 = vadd.f32 %v482, %v821
        %v891 = vadd.f32 %v483, %v825
        %v892 = vadd.f32 %v484, %v827
        %v893 = vadd.f32 %v485, %v829
        %v894 = vadd.f32 %v486, %v831
        %v895 = vadd.f32 %v487, %v835
        %v896 = vadd.f32 %v488, %v837
        %v897 = vadd.f32 %v489, %v839
        %v898 = vadd.f32 %v490, %v841
        %v899 = vadd.f32 %v491, %v845
        %v900 = vadd.f32 %v492, %v847
        %901 = vst [vmem:[#allocation2] sm:$0xff] %v851
        %902 = vst [vmem:[#allocation2 + $0x8] sm:$0xff] %v852
        %903 = vst [vmem:[#allocation2 + $0x10] sm:$0xff] %v853
        %904 = vst [vmem:[#allocation2 + $0x18] sm:$0xff] %v854
        %905 = vst [vmem:[#allocation2 + $0x20] sm:$0xff] %v855
        %906 = vst [vmem:[#allocation2 + $0x28] sm:$0xff] %v856
        %907 = vst [vmem:[#allocation2 + $0x30] sm:$0xff] %v857
        %908 = vst [vmem:[#allocation2 + $0x38] sm:$0xff] %v858
        %909 = vst [vmem:[#allocation2 + $0x40] sm:$0xff] %v859
        %910 = vst [vmem:[#allocation2 + $0x48] sm:$0xff] %v860
        %911 = vst [vmem:[#allocation2 + $0x50] sm:$0xff] %v861
        %912 = vst [vmem:[#allocation2 + $0x58] sm:$0xff] %v862
        %913 = vst [vmem:[#allocation2 + $0x60] sm:$0xff] %v863
        %914 = vst [vmem:[#allocation2 + $0x68] sm:$0xff] %v864
        %915 = vst [vmem:[#allocation2 + $0x70] sm:$0xff] %v865
        %916 = vst [vmem:[#allocation2 + $0x78] sm:$0xff] %v866
        %917 = vst [vmem:[#allocation2 + $0x80] sm:$0xff] %v867
        %918 = vst [vmem:[#allocation2 + $0x88] sm:$0xff] %v868
        %919 = vst [vmem:[#allocation2 + $0x90] sm:$0xff] %v869
        %920 = vst [vmem:[#allocation2 + $0x98] sm:$0xff] %v870
        %921 = vst [vmem:[#allocation2 + $0xa0] sm:$0xff] %v871
        %922 = vst [vmem:[#allocation2 + $0xa8] sm:$0xff] %v872
        %923 = vst [vmem:[#allocation2 + $0xb0] sm:$0xff] %v873
        %924 = vst [vmem:[#allocation2 + $0xb8] sm:$0xff] %v874
        %925 = vst [vmem:[#allocation2 + $0xc0] sm:$0xff] %v875
        %926 = vst [vmem:[#allocation2 + $0xc8] sm:$0xff] %v876
        %927 = vst [vmem:[#allocation2 + $0xd0] sm:$0xff] %v877
        %928 = vst [vmem:[#allocation2 + $0xd8] sm:$0xff] %v878
        %929 = vst [vmem:[#allocation2 + $0xe0] sm:$0xff] %v879
        %930 = vst [vmem:[#allocation2 + $0xe8] sm:$0xff] %v880
        %931 = vst [vmem:[#allocation2 + $0xf0] sm:$0xff] %v881
        %932 = vst [vmem:[#allocation2 + $0xf8] sm:$0xff] %v882
        %933 = vst [vmem:[#allocation2 + $0x100] sm:$0xff] %v883
        %934 = vst [vmem:[#allocation2 + $0x108] sm:$0xff] %v884
        %935 = vst [vmem:[#allocation2 + $0x110] sm:$0xff] %v885
        %936 = vst [vmem:[#allocation2 + $0x118] sm:$0xff] %v886
        %937 = vst [vmem:[#allocation2 + $0x120] sm:$0xff] %v887
        %938 = vst [vmem:[#allocation2 + $0x128] sm:$0xff] %v888
        %939 = vst [vmem:[#allocation2 + $0x130] sm:$0xff] %v889
        %940 = vst [vmem:[#allocation2 + $0x138] sm:$0xff] %v890
        %941 = vst [vmem:[#allocation2 + $0x140] sm:$0xff] %v891
        %942 = vst [vmem:[#allocation2 + $0x148] sm:$0xff] %v892
        %943 = vst [vmem:[#allocation2 + $0x150] sm:$0xff] %v893
        %944 = vst [vmem:[#allocation2 + $0x158] sm:$0xff] %v894
        %945 = vst [vmem:[#allocation2 + $0x160] sm:$0xff] %v895
        %946 = vst [vmem:[#allocation2 + $0x168] sm:$0xff] %v896
        %947 = vst [vmem:[#allocation2 + $0x170] sm:$0xff] %v897
        %948 = vst [vmem:[#allocation2 + $0x178] sm:$0xff] %v898
        %949 = vst [vmem:[#allocation2 + $0x180] sm:$0xff] %v899
        %950 = vst [vmem:[#allocation2 + $0x188] sm:$0xff] %v900
        %p951 = scmp.eq.s32.totalorder %s22, 2
        // Predicated region
        $region78: #{matmul_bias.1} parent=68 // pred_check
          %p952 = pneg %p951
        $region79: #{matmul_bias.1} parent=68 // pred_check_branch
          %954 = sbr.rel (%p952) target = $region81
        $region80: #{matmul_bias.1} parent=68 // pred_region
          %v955 = vld [vmem:[#allocation2] sm:$0xff]
          %v956 = vld [vmem:[#allocation2 + $0x8] sm:$0xff]
          %v957 = vld [vmem:[#allocation2 + $0x10] sm:$0xff]
          %v958 = vld [vmem:[#allocation2 + $0x18] sm:$0xff]
          %v959 = vld [vmem:[#allocation2 + $0x20] sm:$0xff]
          %v960 = vld [vmem:[#allocation2 + $0x28] sm:$0xff]
          %v961 = vld [vmem:[#allocation2 + $0x30] sm:$0xff]
          %v962 = vld [vmem:[#allocation2 + $0x38] sm:$0xff]
          %v963 = vld [vmem:[#allocation2 + $0x40] sm:$0xff]
          %v964 = vld [vmem:[#allocation2 + $0x48] sm:$0xff]
          %v965 = vld [vmem:[#allocation2 + $0x50] sm:$0xff]
          %v966 = vld [vmem:[#allocation2 + $0x58] sm:$0xff]
          %v967 = vld [vmem:[#allocation2 + $0x60] sm:$0xff]
          %v968 = vld [vmem:[#allocation2 + $0x68] sm:$0xff]
          %v969 = vld [vmem:[#allocation2 + $0x70] sm:$0xff]
          %v970 = vld [vmem:[#allocation2 + $0x78] sm:$0xff]
          %v971 = vld [vmem:[#allocation2 + $0x80] sm:$0xff]
          %v972 = vld [vmem:[#allocation2 + $0x88] sm:$0xff]
          %v973 = vld [vmem:[#allocation2 + $0x90] sm:$0xff]
          %v974 = vld [vmem:[#allocation2 + $0x98] sm:$0xff]
          %v975 = vld [vmem:[#allocation2 + $0xa0] sm:$0xff]
          %v976 = vld [vmem:[#allocation2 + $0xa8] sm:$0xff]
          %v977 = vld [vmem:[#allocation2 + $0xb0] sm:$0xff]
          %v978 = vld [vmem:[#allocation2 + $0xb8] sm:$0xff]
          %v979 = vld [vmem:[#allocation2 + $0xc0] sm:$0xff]
          %v980 = vld [vmem:[#allocation2 + $0xc8] sm:$0xff]
          %v981 = vld [vmem:[#allocation2 + $0xd0] sm:$0xff]
          %v982 = vld [vmem:[#allocation2 + $0xd8] sm:$0xff]
          %v983 = vld [vmem:[#allocation2 + $0xe0] sm:$0xff]
          %v984 = vld [vmem:[#allocation2 + $0xe8] sm:$0xff]
          %v985 = vld [vmem:[#allocation2 + $0xf0] sm:$0xff]
          %v986 = vld [vmem:[#allocation2 + $0xf8] sm:$0xff]
          %v987 = vld [vmem:[#allocation2 + $0x100] sm:$0xff]
          %v988 = vld [vmem:[#allocation2 + $0x108] sm:$0xff]
          %v989 = vld [vmem:[#allocation2 + $0x110] sm:$0xff]
          %v990 = vld [vmem:[#allocation2 + $0x118] sm:$0xff]
          %v991 = vld [vmem:[#allocation2 + $0x120] sm:$0xff]
          %v992 = vld [vmem:[#allocation2 + $0x128] sm:$0xff]
          %v993 = vld [vmem:[#allocation2 + $0x130] sm:$0xff]
          %v994 = vld [vmem:[#allocation2 + $0x138] sm:$0xff]
          %v995 = vld [vmem:[#allocation2 + $0x140] sm:$0xff]
          %v996 = vld [vmem:[#allocation2 + $0x148] sm:$0xff]
          %v997 = vld [vmem:[#allocation2 + $0x150] sm:$0xff]
          %v998 = vld [vmem:[#allocation2 + $0x158] sm:$0xff]
          %v999 = vld [vmem:[#allocation2 + $0x160] sm:$0xff]
          %v1000 = vld [vmem:[#allocation2 + $0x168] sm:$0xff]
          %v1001 = vld [vmem:[#allocation2 + $0x170] sm:$0xff]
          %v1002 = vld [vmem:[#allocation2 + $0x178] sm:$0xff]
          %v1003 = vld [vmem:[#allocation2 + $0x180] sm:$0xff]
          %v1004 = vld [vmem:[#allocation2 + $0x188] sm:$0xff]
          %v1005 = vld [vmem:[%s384] sm:$0x3]
          %v1007 = vlaneseq
          %v1008 = vshrl.u32 %v1007, 7
          %v1009 = vsub.s32 0, %v1008
          %v1010 = vrot.slane %v1005, %v1009
          %v1011 = vlaneseq
          %v1012 = vshrl.u32 %v1011, 7
          %v1013 = vsub.s32 1, %v1012
          %v1014 = vrot.slane %v1005, %v1013
          %v1017 = vadd.f32 %v955, %v1010
          %v1018 = vadd.f32 %v956, %v1014
          %v1019 = vadd.f32 %v957, %v1010
          %v1020 = vadd.f32 %v958, %v1014
          %v1021 = vadd.f32 %v959, %v1010
          %v1022 = vadd.f32 %v960, %v1014
          %v1023 = vadd.f32 %v961, %v1010
          %v1024 = vadd.f32 %v962, %v1014
          %v1025 = vadd.f32 %v963, %v1010
          %v1026 = vadd.f32 %v964, %v1014
          %v1027 = vadd.f32 %v965, %v1010
          %v1028 = vadd.f32 %v966, %v1014
          %v1029 = vadd.f32 %v967, %v1010
          %v1030 = vadd.f32 %v968, %v1014
          %v1031 = vadd.f32 %v969, %v1010
          %v1032 = vadd.f32 %v970, %v1014
          %v1033 = vadd.f32 %v971, %v1010
          %v1034 = vadd.f32 %v972, %v1014
          %v1035 = vadd.f32 %v973, %v1010
          %v1036 = vadd.f32 %v974, %v1014
          %v1037 = vadd.f32 %v975, %v1010
          %v1038 = vadd.f32 %v976, %v1014
          %v1039 = vadd.f32 %v977, %v1010
          %v1040 = vadd.f32 %v978, %v1014
          %v1041 = vadd.f32 %v979, %v1010
          %v1042 = vadd.f32 %v980, %v1014
          %v1043 = vadd.f32 %v981, %v1010
          %v1044 = vadd.f32 %v982, %v1014
          %v1045 = vadd.f32 %v983, %v1010
          %v1046 = vadd.f32 %v984, %v1014
          %v1047 = vadd.f32 %v985, %v1010
          %v1048 = vadd.f32 %v986, %v1014
          %v1049 = vadd.f32 %v987, %v1010
          %v1050 = vadd.f32 %v988, %v1014
          %v1051 = vadd.f32 %v989, %v1010
          %v1052 = vadd.f32 %v990, %v1014
          %v1053 = vadd.f32 %v991, %v1010
          %v1054 = vadd.f32 %v992, %v1014
          %v1055 = vadd.f32 %v993, %v1010
          %v1056 = vadd.f32 %v994, %v1014
          %v1057 = vadd.f32 %v995, %v1010
          %v1058 = vadd.f32 %v996, %v1014
          %v1059 = vadd.f32 %v997, %v1010
          %v1060 = vadd.f32 %v998, %v1014
          %v1061 = vadd.f32 %v999, %v1010
          %v1062 = vadd.f32 %v1000, %v1014
          %v1063 = vadd.f32 %v1001, %v1010
          %v1064 = vadd.f32 %v1002, %v1014
          %v1065 = vadd.f32 %v1003, %v1010
          %v1066 = vadd.f32 %v1004, %v1014
          %1067 = vst [vmem:[#allocation4] sm:$0xff] %v1017
          %1068 = vst [vmem:[#allocation4 + $0x8] sm:$0xff] %v1018
          %1069 = vst [vmem:[#allocation4 + $0x10] sm:$0xff] %v1019
          %1070 = vst [vmem:[#allocation4 + $0x18] sm:$0xff] %v1020
          %1071 = vst [vmem:[#allocation4 + $0x20] sm:$0xff] %v1021
          %1072 = vst [vmem:[#allocation4 + $0x28] sm:$0xff] %v1022
          %1073 = vst [vmem:[#allocation4 + $0x30] sm:$0xff] %v1023
          %1074 = vst [vmem:[#allocation4 + $0x38] sm:$0xff] %v1024
          %1075 = vst [vmem:[#allocation4 + $0x40] sm:$0xff] %v1025
          %1076 = vst [vmem:[#allocation4 + $0x48] sm:$0xff] %v1026
          %1077 = vst [vmem:[#allocation4 + $0x50] sm:$0xff] %v1027
          %1078 = vst [vmem:[#allocation4 + $0x58] sm:$0xff] %v1028
          %1079 = vst [vmem:[#allocation4 + $0x60] sm:$0xff] %v1029
          %1080 = vst [vmem:[#allocation4 + $0x68] sm:$0xff] %v1030
          %1081 = vst [vmem:[#allocation4 + $0x70] sm:$0xff] %v1031
          %1082 = vst [vmem:[#allocation4 + $0x78] sm:$0xff] %v1032
          %1083 = vst [vmem:[#allocation4 + $0x80] sm:$0xff] %v1033
          %1084 = vst [vmem:[#allocation4 + $0x88] sm:$0xff] %v1034
          %1085 = vst [vmem:[#allocation4 + $0x90] sm:$0xff] %v1035
          %1086 = vst [vmem:[#allocation4 + $0x98] sm:$0xff] %v1036
          %1087 = vst [vmem:[#allocation4 + $0xa0] sm:$0xff] %v1037
          %1088 = vst [vmem:[#allocation4 + $0xa8] sm:$0xff] %v1038
          %1089 = vst [vmem:[#allocation4 + $0xb0] sm:$0xff] %v1039
          %1090 = vst [vmem:[#allocation4 + $0xb8] sm:$0xff] %v1040
          %1091 = vst [vmem:[#allocation4 + $0xc0] sm:$0xff] %v1041
          %1092 = vst [vmem:[#allocation4 + $0xc8] sm:$0xff] %v1042
          %1093 = vst [vmem:[#allocation4 + $0xd0] sm:$0xff] %v1043
          %1094 = vst [vmem:[#allocation4 + $0xd8] sm:$0xff] %v1044
          %1095 = vst [vmem:[#allocation4 + $0xe0] sm:$0xff] %v1045
          %1096 = vst [vmem:[#allocation4 + $0xe8] sm:$0xff] %v1046
          %1097 = vst [vmem:[#allocation4 + $0xf0] sm:$0xff] %v1047
          %1098 = vst [vmem:[#allocation4 + $0xf8] sm:$0xff] %v1048
          %1099 = vst [vmem:[#allocation4 + $0x100] sm:$0xff] %v1049
          %1100 = vst [vmem:[#allocation4 + $0x108] sm:$0xff] %v1050
          %1101 = vst [vmem:[#allocation4 + $0x110] sm:$0xff] %v1051
          %1102 = vst [vmem:[#allocation4 + $0x118] sm:$0xff] %v1052
          %1103 = vst [vmem:[#allocation4 + $0x120] sm:$0xff] %v1053
          %1104 = vst [vmem:[#allocation4 + $0x128] sm:$0xff] %v1054
          %1105 = vst [vmem:[#allocation4 + $0x130] sm:$0xff] %v1055
          %1106 = vst [vmem:[#allocation4 + $0x138] sm:$0xff] %v1056
          %1107 = vst [vmem:[#allocation4 + $0x140] sm:$0xff] %v1057
          %1108 = vst [vmem:[#allocation4 + $0x148] sm:$0xff] %v1058
          %1109 = vst [vmem:[#allocation4 + $0x150] sm:$0xff] %v1059
          %1110 = vst [vmem:[#allocation4 + $0x158] sm:$0xff] %v1060
          %1111 = vst [vmem:[#allocation4 + $0x160] sm:$0xff] %v1061
          %1112 = vst [vmem:[#allocation4 + $0x168] sm:$0xff] %v1062
          %1113 = vst [vmem:[#allocation4 + $0x170] sm:$0xff] %v1063
          %1114 = vst [vmem:[#allocation4 + $0x178] sm:$0xff] %v1064
          %1115 = vst [vmem:[#allocation4 + $0x180] sm:$0xff] %v1065
          %1116 = vst [vmem:[#allocation4 + $0x188] sm:$0xff] %v1066
        $region81: #{matmul_bias.1} parent=68 // pred_fallthru
          _
        // Predicated region
        $region82: #{matmul_bias.1} parent=68 // pred_check
          %p1117 = pneg %p136
        $region83: #{matmul_bias.1} parent=68 // pred_check_branch
          %1119 = sbr.rel (%p1117) target = $region85
        $region84: #{matmul_bias.1} parent=68 // pred_region
          %s1120 = smul.u32 25, %s20
          %s1121 = smul.u32 2, %s21
          %s1123 = ssub.s32 6400, 6400
          %1124 = vsyncadd [#allocation5], %s1123
          %s1125 = smul.addr %s1120, 2
          %s1126 = sadd.s32 %s1121, %s1125
          %s1127 = smul.addr %s1126, 128
          %s1128 = scalar_lea.hbm %s3, %s1127
          %s1129 = sshll.u32 [#allocation4], 4
          %s1130 = int_to_ptr.vmem [resolvable:$true] %s1129
          %1135 = dma.vmem_to_hbm [thread:$0]  %s1130, 6400, %s1128, [#allocation5], 256, 256, 16
        $region85: #{matmul_bias.1} parent=68 // pred_fallthru
          _
        // Predicated region
        $region86: #{matmul_bias.1} parent=68 // pred_check
          %p1136 = pneg %p136
        $region87: #{matmul_bias.1} parent=68 // pred_check_branch
          %1138 = sbr.rel (%p1136) target = $region89
        $region88: #{matmul_bias.1} parent=68 // pred_region
          %1139 = dma.done [#allocation5], 6400
        $region89: #{matmul_bias.1} parent=68 // pred_fallthru
          _
      $region69: #{matmul_bias.1} parent=5 // pred_fallthru
        _
      %p1140 = scmp.le.s32.totalorder 2, %s10
      // Predicated region
      $region90: #{matmul_bias.1} parent=5 // pred_check
        %p1141 = pneg %p1140
      $region91: #{matmul_bias.1} parent=5 // pred_check_branch
        %1143 = sbr.rel (%p1141) target = $region93
      $region92: #{matmul_bias.1} parent=5 // pred_region
        %s1144 = ssub.s32 %s10, 2
      $region93: #{matmul_bias.1} parent=5 // pred_fallthru
        _
    $region6: #{matmul_bias.1} parent=1 // loop_footer
      %s14 = sadd.s32 1, %s10
    $region7: #{matmul_bias.1} parent=1 // loop_footer_branch
      %9 = sbr.rel target = $region3
    $region8: #{matmul_bias.1} parent=1 // loop_exit
      _
    %1145 = vsyncpa [#allocation5], 1
    %s1146 = scalar_lea.sflag [#allocation5], 1
    %1147 = vsyncpa %s1146, 1

</llo_original>
